<compile_context>
chip_gen: v6e
topology: v6e:2x2x1
jax: 0.10.0
libtpu: 0.0.40
codegen_flags: <defaults>
</compile_context>

<pallas_src>
import jax
import jax.numpy as jnp
from jax import lax
from jax.experimental import pallas as pl
from jax.experimental.pallas import tpu as pltpu

LANE = 128
SUBLANE_BF16 = 16


def _round_up(n, m):
    return ((n + m - 1) // m) * m


def _pad2d(a, rows, cols):
    pr, pc = rows - a.shape[0], cols - a.shape[1]
    if pr == 0 and pc == 0:
        return a
    return jnp.pad(a, ((0, pr), (0, pc)))


# ----------------------------------------------------------------------------
# Kernel
# ----------------------------------------------------------------------------
def ae_forward_kernel(x_ref,
                      w1_ref, b1_ref,
                      w2_ref, b2_ref,
                      w3_ref, b3_ref,
                      w4_ref, b4_ref,
                      w5_ref, b5_ref,
                      out_ref):
    # x arrives at its natural f32 width; cast to bf16 for the MXU in-kernel.
    # All matmuls accumulate in f32; bias add / ReLU / normalize stay f32.
    x = x_ref[...].astype(jnp.bfloat16)

    # ----- encoder -----
    h = jnp.dot(x, w1_ref[...], preferred_element_type=jnp.float32) + b1_ref[...]
    h = jnp.maximum(h, 0.0)
    z = jnp.dot(h.astype(jnp.bfloat16), w2_ref[...],
                preferred_element_type=jnp.float32) + b2_ref[...]

    # ----- F.normalize(p=2, dim=1, eps=1e-12) -----
    # rsqrt(max(ss, eps^2)) == 1 / max(||z||, eps); padded latent lanes are
    # exactly zero so they do not perturb the norm.
    ss = jnp.sum(z * z, axis=1, keepdims=True)
    z = z * lax.rsqrt(jnp.maximum(ss, 1e-24))

    # ----- decoder -----
    d = jnp.dot(z.astype(jnp.bfloat16), w3_ref[...],
                preferred_element_type=jnp.float32) + b3_ref[...]
    d = jnp.maximum(d, 0.0)

    # ----- final layer -----
    f = jnp.dot(d.astype(jnp.bfloat16), w4_ref[...],
                preferred_element_type=jnp.float32) + b4_ref[...]
    f = jnp.maximum(f, 0.0)
    out = jnp.dot(f.astype(jnp.bfloat16), w5_ref[...],
                  preferred_element_type=jnp.float32) + b5_ref[...]

    out_ref[...] = out.astype(out_ref.dtype)


# ----------------------------------------------------------------------------
# Parameter prep (run ONCE, outside the per-call wrapper)
# ----------------------------------------------------------------------------
def prepare_params(params):
    """Pad internal (hidden/latent) feature dims to 128 lanes, keep the
    input/output feature widths natural, and cast MXU operands to bf16 once."""
    input_dim, hidden = params["w1"].shape
    latent = params["w2"].shape[1]
    Hp, Lp = _round_up(hidden, LANE), _round_up(latent, LANE)
    bf, f32 = jnp.bfloat16, jnp.float32
    return dict(
        w1=_pad2d(params["w1"], input_dim, Hp).astype(bf),   # (in,  Hp)
        b1=_pad2d(params["b1"], 1, Hp).astype(f32),
        w2=_pad2d(params["w2"], Hp, Lp).astype(bf),           # (Hp,  Lp)
        b2=_pad2d(params["b2"], 1, Lp).astype(f32),
        w3=_pad2d(params["w3"], Lp, Hp).astype(bf),           # (Lp,  Hp)
        b3=_pad2d(params["b3"], 1, Hp).astype(f32),
        w4=_pad2d(params["w4"], Hp, Hp).astype(bf),           # (Hp,  Hp)
        b4=_pad2d(params["b4"], 1, Hp).astype(f32),
        w5=_pad2d(params["w5"], Hp, input_dim).astype(bf),    # (Hp,  in) rows-only pad
        b5=params["b5"].astype(f32),                          # (1,   in) unpadded
    )


def _choose_block_batch(B, target_rows=1024):
    # Even number of grid steps >= 2 (so v7x's two TensorCores both get work),
    # block_batch a multiple of 16 (bf16 sublane packing), rows/step capped
    # near target_rows to amortize the ~0.35us fixed per-grid-step overhead.
    steps = max(2, pl.cdiv(B, target_rows))
    if steps % 2:
        steps += 1
    block_batch = _round_up(pl.cdiv(B, steps), SUBLANE_BF16)
    return block_batch, steps


# ----------------------------------------------------------------------------
# Wrapper
# ----------------------------------------------------------------------------
def ae_forward(x, prepped, *, block_batch=None):
    """AE forward pass.  x: (B, input_dim) f32.  prepped: prepare_params(...)."""
    B, input_dim = x.shape
    Hp = prepped["w1"].shape[1]
    Lp = prepped["w2"].shape[1]

    if block_batch is None:
        block_batch, steps = _choose_block_batch(B)
    else:
        steps = pl.cdiv(B, block_batch)
    Bp = block_batch * steps

    # Only batch rows (if any) are padded; feature width and dtype are natural.
    xp = x if Bp == B else jnp.pad(x, ((0, Bp - B), (0, 0)))

    def full_spec(shape):
        # Whole (small, padded) parameter resident in VMEM on every grid step.
        n = len(shape)
        return pl.BlockSpec(shape, lambda i, n=n: (0,) * n)

    weights = ("w1", "w2", "w3", "w4", "w5")
    biases = ("b1", "b2", "b3", "b4", "b5")
    cost = pl.CostEstimate(
        flops=2 * Bp * (input_dim * Hp + Hp * Lp + Lp * Hp + Hp * Hp
                        + Hp * input_dim),
        transcendentals=Bp,  # one rsqrt per row
        bytes_accessed=(2 * Bp * input_dim * 4
                        + sum(int(prepped[w].size) * 2 for w in weights)
                        + sum(int(prepped[b].size) * 4 for b in biases)),
    )

    out_p = pl.pallas_call(
        ae_forward_kernel,
        out_shape=jax.ShapeDtypeStruct((Bp, input_dim), jnp.float32),
        grid_spec=pltpu.PrefetchScalarGridSpec(
            num_scalar_prefetch=0,
            grid=(steps,),
            in_specs=[
                pl.BlockSpec((block_batch, input_dim), lambda i: (i, 0)),  # x
                full_spec(prepped["w1"].shape), full_spec(prepped["b1"].shape),
                full_spec(prepped["w2"].shape), full_spec(prepped["b2"].shape),
                full_spec(prepped["w3"].shape), full_spec(prepped["b3"].shape),
                full_spec(prepped["w4"].shape), full_spec(prepped["b4"].shape),
                full_spec(prepped["w5"].shape), full_spec(prepped["b5"].shape),
            ],
            out_specs=pl.BlockSpec((block_batch, input_dim), lambda i: (i, 0)),
        ),
        compiler_params=pltpu.CompilerParams(
            dimension_semantics=("parallel",)),
        cost_estimate=cost,
    )(xp, prepped["w1"], prepped["b1"], prepped["w2"], prepped["b2"],
      prepped["w3"], prepped["b3"], prepped["w4"], prepped["b4"],
      prepped["w5"], prepped["b5"])

    return out_p if Bp == B else out_p[:B]


# ----------------------------------------------------------------------------
# Init + pure-JAX reference
# ----------------------------------------------------------------------------
def init_params(key, input_dim, hidden, latent_dim):
    """Deterministic nn.Linear-style init (uniform +/- 1/sqrt(fan_in))."""
    def linear(key, fan_in, fan_out):
        kw, kb = jax.random.split(key)
        bound = 1.0 / jnp.sqrt(fan_in)
        w = jax.random.uniform(kw, (fan_in, fan_out), jnp.float32, -bound, bound)
        b = jax.random.uniform(kb, (1, fan_out), jnp.float32, -bound, bound)
        return w, b

    keys = jax.random.split(key, 5)
    w1, b1 = linear(keys[0], input_dim, hidden)      # encoder Linear 1
    w2, b2 = linear(keys[1], hidden, latent_dim)     # encoder Linear 2
    w3, b3 = linear(keys[2], latent_dim, hidden)     # decoder Linear
    w4, b4 = linear(keys[3], hidden, hidden)         # final_layer Linear 1
    w5, b5 = linear(keys[4], hidden, input_dim)      # final_layer Linear 2
    return dict(w1=w1, b1=b1, w2=w2, b2=b2, w3=w3, b3=b3,
                w4=w4, b4=b4, w5=w5, b5=b5)


def ae_forward_ref(x, p):
    """Pure-JAX reference mirroring the kernel's precision policy
    (bf16 MXU inputs, f32 accumulation / elementwise)."""
    bf = lambda a: a.astype(jnp.bfloat16)
    f32 = jnp.float32
    h = jnp.maximum(jnp.dot(bf(x), bf(p["w1"]), preferred_element_type=f32)
                    + p["b1"], 0.0)
    z = jnp.dot(bf(h), bf(p["w2"]), preferred_element_type=f32) + p["b2"]
    ss = jnp.sum(z * z, axis=1, keepdims=True)
    z = z * lax.rsqrt(jnp.maximum(ss, 1e-24))
    d = jnp.maximum(jnp.dot(bf(z), bf(p["w3"]), preferred_element_type=f32)
                    + p["b3"], 0.0)
    f = jnp.maximum(jnp.dot(bf(d), bf(p["w4"]), preferred_element_type=f32)
                    + p["b4"], 0.0)
    return jnp.dot(bf(f), bf(p["w5"]), preferred_element_type=f32) + p["b5"]


if __name__ == "__main__":
    batch = 256          # -> 2 even grid steps of 128 rows (pipelined, no pad)
    input_dim = 32
    hidden = 64          # hidden_dims = [64]
    latent_dim = 16

    key = jax.random.PRNGKey(0)
    kx, kp = jax.random.split(key)
    x = jax.random.normal(kx, (batch, input_dim), jnp.float32)
    params = init_params(kp, input_dim, hidden, latent_dim)

    prepped = prepare_params(params)          # pad + bf16-cast weights ONCE
    fwd = jax.jit(ae_forward)

    out = fwd(x, prepped)
    out = jax.block_until_ready(out)

    ref = ae_forward_ref(x, params)
    assert out.shape == (batch, input_dim)
    assert jnp.allclose(out, ref, atol=1e-3, rtol=1e-3), \
        float(jnp.max(jnp.abs(out - ref)))

    print("KERNEL_OK")
</pallas_src>

<mosaic_0001>
module attributes {stable_mosaic.version = 11 : i64} {
  func.func @ae_forward_kernel(%arg0: i32, %arg1: memref<128x32xf32, #tpu.memory_space<vmem>>, %arg2: memref<32x128xbf16, #tpu.memory_space<vmem>>, %arg3: memref<1x128xf32, #tpu.memory_space<vmem>>, %arg4: memref<128x128xbf16, #tpu.memory_space<vmem>>, %arg5: memref<1x128xf32, #tpu.memory_space<vmem>>, %arg6: memref<128x128xbf16, #tpu.memory_space<vmem>>, %arg7: memref<1x128xf32, #tpu.memory_space<vmem>>, %arg8: memref<128x128xbf16, #tpu.memory_space<vmem>>, %arg9: memref<1x128xf32, #tpu.memory_space<vmem>>, %arg10: memref<128x32xbf16, #tpu.memory_space<vmem>>, %arg11: memref<1x32xf32, #tpu.memory_space<vmem>>, %arg12: memref<128x32xf32, #tpu.memory_space<vmem>>) attributes {dimension_semantics = [#tpu.dimension_semantics<parallel>], iteration_bounds = array<i64: 2>, scalar_prefetch = 0 : i64, scratch_operands = 0 : i64, tpu.core_type = #tpu.core_type<tc>, window_params = [{transform_indices = @transform_0, window_bounds = array<i64: 128, 32>}, {pipeline_mode = #tpu.pipeline_mode<synchronous>, transform_indices = @transform_1, window_bounds = array<i64: 32, 128>}, {pipeline_mode = #tpu.pipeline_mode<synchronous>, transform_indices = @transform_2, window_bounds = array<i64: 1, 128>}, {pipeline_mode = #tpu.pipeline_mode<synchronous>, transform_indices = @transform_3, window_bounds = array<i64: 128, 128>}, {pipeline_mode = #tpu.pipeline_mode<synchronous>, transform_indices = @transform_4, window_bounds = array<i64: 1, 128>}, {pipeline_mode = #tpu.pipeline_mode<synchronous>, transform_indices = @transform_5, window_bounds = array<i64: 128, 128>}, {pipeline_mode = #tpu.pipeline_mode<synchronous>, transform_indices = @transform_6, window_bounds = array<i64: 1, 128>}, {pipeline_mode = #tpu.pipeline_mode<synchronous>, transform_indices = @transform_7, window_bounds = array<i64: 128, 128>}, {pipeline_mode = #tpu.pipeline_mode<synchronous>, transform_indices = @transform_8, window_bounds = array<i64: 1, 128>}, {pipeline_mode = #tpu.pipeline_mode<synchronous>, transform_indices = @transform_9, window_bounds = array<i64: 128, 32>}, {pipeline_mode = #tpu.pipeline_mode<synchronous>, transform_indices = @transform_10, window_bounds = array<i64: 1, 32>}, {transform_indices = @transform_11, window_bounds = array<i64: 128, 32>}]} {
    %c0 = arith.constant 0 : index
    %c0_0 = arith.constant 0 : index
    %0 = vector.load %arg1[%c0, %c0_0] : memref<128x32xf32, #tpu.memory_space<vmem>>, vector<128x32xf32>
    %1 = arith.truncf %0 : vector<128x32xf32> to vector<128x32xbf16>
    %c0_1 = arith.constant 0 : index
    %c0_2 = arith.constant 0 : index
    %2 = vector.load %arg2[%c0_1, %c0_2] : memref<32x128xbf16, #tpu.memory_space<vmem>>, vector<32x128xbf16>
    %cst = arith.constant dense<0.000000e+00> : vector<128x128xf32>
    %3 = tpu.matmul %1, %2, %cst {dimension_numbers = #tpu.dot_dimension_numbers<[1], [0], [0], [1], [0, 0, 1, 1], [], []>} : vector<128x32xbf16>, vector<32x128xbf16>, vector<128x128xf32> -> vector<128x128xf32>
    %c0_3 = arith.constant 0 : index
    %c0_4 = arith.constant 0 : index
    %4 = vector.load %arg3[%c0_3, %c0_4] : memref<1x128xf32, #tpu.memory_space<vmem>>, vector<1x128xf32>
    %5 = vector.broadcast %4 : vector<1x128xf32> to vector<128x128xf32>
    %6 = arith.addf %3, %5 : vector<128x128xf32>
    %cst_5 = arith.constant 0.000000e+00 : f32
    %7 = vector.broadcast %cst_5 : f32 to vector<128x128xf32>
    %8 = arith.maximumf %6, %7 : vector<128x128xf32>
    %9 = arith.truncf %8 : vector<128x128xf32> to vector<128x128xbf16>
    %c0_6 = arith.constant 0 : index
    %c0_7 = arith.constant 0 : index
    %10 = vector.load %arg4[%c0_6, %c0_7] : memref<128x128xbf16, #tpu.memory_space<vmem>>, vector<128x128xbf16>
    %cst_8 = arith.constant dense<0.000000e+00> : vector<128x128xf32>
    %11 = tpu.matmul %9, %10, %cst_8 {dimension_numbers = #tpu.dot_dimension_numbers<[1], [0], [0], [1], [0, 0, 1, 1], [], []>} : vector<128x128xbf16>, vector<128x128xbf16>, vector<128x128xf32> -> vector<128x128xf32>
    %c0_9 = arith.constant 0 : index
    %c0_10 = arith.constant 0 : index
    %12 = vector.load %arg5[%c0_9, %c0_10] : memref<1x128xf32, #tpu.memory_space<vmem>>, vector<1x128xf32>
    %13 = vector.broadcast %12 : vector<1x128xf32> to vector<128x128xf32>
    %14 = arith.addf %11, %13 : vector<128x128xf32>
    %15 = arith.mulf %14, %14 : vector<128x128xf32>
    %cst_11 = arith.constant dense<0.000000e+00> : vector<128xf32>
    %16 = vector.multi_reduction <add>, %15, %cst_11 [1] : vector<128x128xf32> to vector<128xf32>
    %17 = vector.shape_cast %16 : vector<128xf32> to vector<128x1xf32>
    %cst_12 = arith.constant 1.000000e-24 : f32
    %18 = vector.broadcast %cst_12 : f32 to vector<128x1xf32>
    %19 = arith.maximumf %17, %18 : vector<128x1xf32>
    %20 = math.rsqrt %19 : vector<128x1xf32>
    %21 = vector.broadcast %20 : vector<128x1xf32> to vector<128x128xf32>
    %22 = arith.mulf %14, %21 : vector<128x128xf32>
    %23 = arith.truncf %22 : vector<128x128xf32> to vector<128x128xbf16>
    %c0_13 = arith.constant 0 : index
    %c0_14 = arith.constant 0 : index
    %24 = vector.load %arg6[%c0_13, %c0_14] : memref<128x128xbf16, #tpu.memory_space<vmem>>, vector<128x128xbf16>
    %cst_15 = arith.constant dense<0.000000e+00> : vector<128x128xf32>
    %25 = tpu.matmul %23, %24, %cst_15 {dimension_numbers = #tpu.dot_dimension_numbers<[1], [0], [0], [1], [0, 0, 1, 1], [], []>} : vector<128x128xbf16>, vector<128x128xbf16>, vector<128x128xf32> -> vector<128x128xf32>
    %c0_16 = arith.constant 0 : index
    %c0_17 = arith.constant 0 : index
    %26 = vector.load %arg7[%c0_16, %c0_17] : memref<1x128xf32, #tpu.memory_space<vmem>>, vector<1x128xf32>
    %27 = vector.broadcast %26 : vector<1x128xf32> to vector<128x128xf32>
    %28 = arith.addf %25, %27 : vector<128x128xf32>
    %cst_18 = arith.constant 0.000000e+00 : f32
    %29 = vector.broadcast %cst_18 : f32 to vector<128x128xf32>
    %30 = arith.maximumf %28, %29 : vector<128x128xf32>
    %31 = arith.truncf %30 : vector<128x128xf32> to vector<128x128xbf16>
    %c0_19 = arith.constant 0 : index
    %c0_20 = arith.constant 0 : index
    %32 = vector.load %arg8[%c0_19, %c0_20] : memref<128x128xbf16, #tpu.memory_space<vmem>>, vector<128x128xbf16>
    %cst_21 = arith.constant dense<0.000000e+00> : vector<128x128xf32>
    %33 = tpu.matmul %31, %32, %cst_21 {dimension_numbers = #tpu.dot_dimension_numbers<[1], [0], [0], [1], [0, 0, 1, 1], [], []>} : vector<128x128xbf16>, vector<128x128xbf16>, vector<128x128xf32> -> vector<128x128xf32>
    %c0_22 = arith.constant 0 : index
    %c0_23 = arith.constant 0 : index
    %34 = vector.load %arg9[%c0_22, %c0_23] : memref<1x128xf32, #tpu.memory_space<vmem>>, vector<1x128xf32>
    %35 = vector.broadcast %34 : vector<1x128xf32> to vector<128x128xf32>
    %36 = arith.addf %33, %35 : vector<128x128xf32>
    %cst_24 = arith.constant 0.000000e+00 : f32
    %37 = vector.broadcast %cst_24 : f32 to vector<128x128xf32>
    %38 = arith.maximumf %36, %37 : vector<128x128xf32>
    %39 = arith.truncf %38 : vector<128x128xf32> to vector<128x128xbf16>
    %c0_25 = arith.constant 0 : index
    %c0_26 = arith.constant 0 : index
    %40 = vector.load %arg10[%c0_25, %c0_26] : memref<128x32xbf16, #tpu.memory_space<vmem>>, vector<128x32xbf16>
    %cst_27 = arith.constant dense<0.000000e+00> : vector<128x32xf32>
    %41 = tpu.matmul %39, %40, %cst_27 {dimension_numbers = #tpu.dot_dimension_numbers<[1], [0], [0], [1], [0, 0, 1, 1], [], []>} : vector<128x128xbf16>, vector<128x32xbf16>, vector<128x32xf32> -> vector<128x32xf32>
    %c0_28 = arith.constant 0 : index
    %c0_29 = arith.constant 0 : index
    %42 = vector.load %arg11[%c0_28, %c0_29] : memref<1x32xf32, #tpu.memory_space<vmem>>, vector<1x32xf32>
    %43 = vector.broadcast %42 : vector<1x32xf32> to vector<128x32xf32>
    %44 = arith.addf %41, %43 : vector<128x32xf32>
    %c0_30 = arith.constant 0 : index
    %c0_31 = arith.constant 0 : index
    %45 = vector.load %arg12[%c0_30, %c0_31] : memref<128x32xf32, #tpu.memory_space<vmem>>, vector<128x32xf32>
    tpu.vector_store %arg12[%c0_30, %c0_31], %44 {strides = array<i32>} : memref<128x32xf32, #tpu.memory_space<vmem>>, vector<128x32xf32>,
    return
  }
  func.func @transform_0(%arg0: i32) -> (i32, i32) {
    %c0_i32 = arith.constant 0 : i32
    %c0_i32_0 = arith.constant 0 : i32
    return %arg0, %c0_i32 : i32, i32
  }
  func.func @transform_1(%arg0: i32) -> (i32, i32) {
    %c0_i32 = arith.constant 0 : i32
    %c0_i32_0 = arith.constant 0 : i32
    %c0_i32_1 = arith.constant 0 : i32
    return %c0_i32, %c0_i32_0 : i32, i32
  }
  func.func @transform_2(%arg0: i32) -> (i32, i32) {
    %c0_i32 = arith.constant 0 : i32
    %c0_i32_0 = arith.constant 0 : i32
    %c0_i32_1 = arith.constant 0 : i32
    return %c0_i32, %c0_i32_0 : i32, i32
  }
  func.func @transform_3(%arg0: i32) -> (i32, i32) {
    %c0_i32 = arith.constant 0 : i32
    %c0_i32_0 = arith.constant 0 : i32
    %c0_i32_1 = arith.constant 0 : i32
    return %c0_i32, %c0_i32_0 : i32, i32
  }
  func.func @transform_4(%arg0: i32) -> (i32, i32) {
    %c0_i32 = arith.constant 0 : i32
    %c0_i32_0 = arith.constant 0 : i32
    %c0_i32_1 = arith.constant 0 : i32
    return %c0_i32, %c0_i32_0 : i32, i32
  }
  func.func @transform_5(%arg0: i32) -> (i32, i32) {
    %c0_i32 = arith.constant 0 : i32
    %c0_i32_0 = arith.constant 0 : i32
    %c0_i32_1 = arith.constant 0 : i32
    return %c0_i32, %c0_i32_0 : i32, i32
  }
  func.func @transform_6(%arg0: i32) -> (i32, i32) {
    %c0_i32 = arith.constant 0 : i32
    %c0_i32_0 = arith.constant 0 : i32
    %c0_i32_1 = arith.constant 0 : i32
    return %c0_i32, %c0_i32_0 : i32, i32
  }
  func.func @transform_7(%arg0: i32) -> (i32, i32) {
    %c0_i32 = arith.constant 0 : i32
    %c0_i32_0 = arith.constant 0 : i32
    %c0_i32_1 = arith.constant 0 : i32
    return %c0_i32, %c0_i32_0 : i32, i32
  }
  func.func @transform_8(%arg0: i32) -> (i32, i32) {
    %c0_i32 = arith.constant 0 : i32
    %c0_i32_0 = arith.constant 0 : i32
    %c0_i32_1 = arith.constant 0 : i32
    return %c0_i32, %c0_i32_0 : i32, i32
  }
  func.func @transform_9(%arg0: i32) -> (i32, i32) {
    %c0_i32 = arith.constant 0 : i32
    %c0_i32_0 = arith.constant 0 : i32
    %c0_i32_1 = arith.constant 0 : i32
    return %c0_i32, %c0_i32_0 : i32, i32
  }
  func.func @transform_10(%arg0: i32) -> (i32, i32) {
    %c0_i32 = arith.constant 0 : i32
    %c0_i32_0 = arith.constant 0 : i32
    %c0_i32_1 = arith.constant 0 : i32
    return %c0_i32, %c0_i32_0 : i32, i32
  }
  func.func @transform_11(%arg0: i32) -> (i32, i32) {
    %c0_i32 = arith.constant 0 : i32
    %c0_i32_0 = arith.constant 0 : i32
    return %arg0, %c0_i32 : i32, i32
  }
}

</mosaic_0001>

<llo_original>
// kernel: ae_forward.1
$region0: #{ae_forward.1}
  #allocation0 [shape = 'u32[]', space=smem, size = 0x4, offset = 0x4, fixed_abs, tag = 'smem constant byte address 0x4 - core index']
  #allocation1 [shape = 'u32[144,128]{1,0:T(1,128)}', space=vmem, size = 0x12000, scoped, tag = 'internal scratch']
  %s0 = inlined_call_operand.vmem [shape: f32[256,32], index: 0, kind: input, shape index: {}]
  %s1 = inlined_call_operand.vmem [shape: bf16[32,128], index: 1, kind: input, shape index: {}]
  %s2 = inlined_call_operand.vmem [shape: f32[1,128], index: 2, kind: input, shape index: {}]
  %s3 = inlined_call_operand.vmem [shape: bf16[128,128], index: 3, kind: input, shape index: {}]
  %s4 = inlined_call_operand.vmem [shape: f32[1,128], index: 4, kind: input, shape index: {}]
  %s5 = inlined_call_operand.vmem [shape: bf16[128,128], index: 5, kind: input, shape index: {}]
  %s6 = inlined_call_operand.vmem [shape: f32[1,128], index: 6, kind: input, shape index: {}]
  %s7 = inlined_call_operand.vmem [shape: bf16[128,128], index: 7, kind: input, shape index: {}]
  %s8 = inlined_call_operand.vmem [shape: f32[1,128], index: 8, kind: input, shape index: {}]
  %s9 = inlined_call_operand.vmem [shape: bf16[128,32], index: 9, kind: input, shape index: {}]
  %s10 = inlined_call_operand.vmem [shape: f32[1,32], index: 10, kind: input, shape index: {}]
  %s11 = inlined_call_operand.vmem [shape: f32[256,32], index: 11, kind: output, shape index: {}]
  %s12 = sld [smem:[#allocation0]]
  $region77: #{ae_forward.1} parent=0
    _
  %s14 = ssub.s32 1, %s12
  %s15 = scalar_select 0, %s14, %s12
  loop: start=0, step=1, limit=4
  $region2: #{ae_forward.1} parent=0 // loop_pre_header
    _
  $region3: #{ae_forward.1} parent=0 // loop_header
    %s17 = sphi 0, %s21
    %p18 = scmp.ge.s32.totalorder %s17, 4
    %s27 = sphi 0, %s29
    %s30 = sphi 0, %s27
    %s31 = sphi 0, %s30
    %s47 = sphi 0, %s31
    %s51 = sphi 0, %s51
    %s53 = sphi 0, %s51
    %s54 = sphi 0, %s53
    %s68 = sphi 0, %s54
    %s72 = sphi 0, %s72
    %s74 = sphi 0, %s72
    %s75 = sphi 0, %s74
    %s89 = sphi 0, %s75
    %s93 = sphi 0, %s93
    %s95 = sphi 0, %s93
    %s96 = sphi 0, %s95
    %s110 = sphi 0, %s96
    %s114 = sphi 0, %s114
    %s116 = sphi 0, %s114
    %s117 = sphi 0, %s116
    %s131 = sphi 0, %s117
    %s135 = sphi 0, %s135
    %s137 = sphi 0, %s135
    %s138 = sphi 0, %s137
    %s152 = sphi 0, %s138
    %s156 = sphi 0, %s156
    %s158 = sphi 0, %s156
    %s159 = sphi 0, %s158
    %s173 = sphi 0, %s159
    %s177 = sphi 0, %s177
    %s179 = sphi 0, %s177
    %s180 = sphi 0, %s179
    %s194 = sphi 0, %s180
    %s198 = sphi 0, %s198
    %s200 = sphi 0, %s198
    %s201 = sphi 0, %s200
    %s215 = sphi 0, %s201
    %s219 = sphi 0, %s219
    %s221 = sphi 0, %s219
    %s222 = sphi 0, %s221
    %s236 = sphi 0, %s222
    %s240 = sphi 0, %s240
    %s242 = sphi 0, %s240
    %s243 = sphi 0, %s242
    %s257 = sphi 0, %s243
    %s263 = sphi 0, %s265
    %s266 = sphi 0, %s263
    %s267 = sphi 0, %s266
    %s283 = sphi 0, %s267
  $region4: #{ae_forward.1} parent=0 // loop_header_branch
    %20 = sbr.rel (%p18) target = $region8
  $region5: #{ae_forward.1} parent=0 // loop_body
    %s22 = ssub.s32 %s17, 1
    %s23 = ssub.s32 %s17, 2
    %s24 = sadd.s32 %s17, 1
    %s25 = ssub.s32 %s17, %s24
    %p26 = scmp.eq.s32.totalorder %s25, 0
    %s28 = sadd.s32 %s27, 1
    %s29 = scalar_select %p26, %s27, %s28
    %p32 = pneg %p26
    %p33 = scmp.eq.s32.totalorder %s17, 1
    %p34 = por %p32, %p33
    %p35 = scmp.ne.s32.totalorder %s27, %s30
    %p36 = scmp.eq.s32.totalorder %s17, 0
    %p37 = por %p35, %p36
    %p38 = scmp.ne.s32.totalorder %s27, %s30
    %p39 = scmp.eq.s32.totalorder %s22, 1
    %p40 = por %p38, %p39
    %p41 = scmp.ne.s32.totalorder %s30, %s31
    %p42 = scmp.eq.s32.totalorder %s22, 0
    %p43 = por %p41, %p42
    %p44 = scmp.ne.s32.totalorder %s30, %s31
    %p45 = scmp.eq.s32.totalorder %s23, 1
    %p46 = por %p44, %p45
    %p48 = scmp.ne.s32.totalorder %s31, %s47
    %p49 = scmp.eq.s32.totalorder %s23, 0
    %p50 = por %p48, %p49
    %s52 = sadd.s32 %s51, 1
    %p55 = scmp.eq.s32.totalorder %s17, 1
    %p56 = scmp.ne.s32.totalorder %s51, %s53
    %p57 = scmp.eq.s32.totalorder %s17, 0
    %p58 = por %p56, %p57
    %p59 = scmp.ne.s32.totalorder %s51, %s53
    %p60 = scmp.eq.s32.totalorder %s22, 1
    %p61 = por %p59, %p60
    %p62 = scmp.ne.s32.totalorder %s53, %s54
    %p63 = scmp.eq.s32.totalorder %s22, 0
    %p64 = por %p62, %p63
    %p65 = scmp.ne.s32.totalorder %s53, %s54
    %p66 = scmp.eq.s32.totalorder %s23, 1
    %p67 = por %p65, %p66
    %p69 = scmp.ne.s32.totalorder %s54, %s68
    %p70 = scmp.eq.s32.totalorder %s23, 0
    %p71 = por %p69, %p70
    %s73 = sadd.s32 %s72, 1
    %p76 = scmp.eq.s32.totalorder %s17, 1
    %p77 = scmp.ne.s32.totalorder %s72, %s74
    %p78 = scmp.eq.s32.totalorder %s17, 0
    %p79 = por %p77, %p78
    %p80 = scmp.ne.s32.totalorder %s72, %s74
    %p81 = scmp.eq.s32.totalorder %s22, 1
    %p82 = por %p80, %p81
    %p83 = scmp.ne.s32.totalorder %s74, %s75
    %p84 = scmp.eq.s32.totalorder %s22, 0
    %p85 = por %p83, %p84
    %p86 = scmp.ne.s32.totalorder %s74, %s75
    %p87 = scmp.eq.s32.totalorder %s23, 1
    %p88 = por %p86, %p87
    %p90 = scmp.ne.s32.totalorder %s75, %s89
    %p91 = scmp.eq.s32.totalorder %s23, 0
    %p92 = por %p90, %p91
    %s94 = sadd.s32 %s93, 1
    %p97 = scmp.eq.s32.totalorder %s17, 1
    %p98 = scmp.ne.s32.totalorder %s93, %s95
    %p99 = scmp.eq.s32.totalorder %s17, 0
    %p100 = por %p98, %p99
    %p101 = scmp.ne.s32.totalorder %s93, %s95
    %p102 = scmp.eq.s32.totalorder %s22, 1
    %p103 = por %p101, %p102
    %p104 = scmp.ne.s32.totalorder %s95, %s96
    %p105 = scmp.eq.s32.totalorder %s22, 0
    %p106 = por %p104, %p105
    %p107 = scmp.ne.s32.totalorder %s95, %s96
    %p108 = scmp.eq.s32.totalorder %s23, 1
    %p109 = por %p107, %p108
    %p111 = scmp.ne.s32.totalorder %s96, %s110
    %p112 = scmp.eq.s32.totalorder %s23, 0
    %p113 = por %p111, %p112
    %s115 = sadd.s32 %s114, 1
    %p118 = scmp.eq.s32.totalorder %s17, 1
    %p119 = scmp.ne.s32.totalorder %s114, %s116
    %p120 = scmp.eq.s32.totalorder %s17, 0
    %p121 = por %p119, %p120
    %p122 = scmp.ne.s32.totalorder %s114, %s116
    %p123 = scmp.eq.s32.totalorder %s22, 1
    %p124 = por %p122, %p123
    %p125 = scmp.ne.s32.totalorder %s116, %s117
    %p126 = scmp.eq.s32.totalorder %s22, 0
    %p127 = por %p125, %p126
    %p128 = scmp.ne.s32.totalorder %s116, %s117
    %p129 = scmp.eq.s32.totalorder %s23, 1
    %p130 = por %p128, %p129
    %p132 = scmp.ne.s32.totalorder %s117, %s131
    %p133 = scmp.eq.s32.totalorder %s23, 0
    %p134 = por %p132, %p133
    %s136 = sadd.s32 %s135, 1
    %p139 = scmp.eq.s32.totalorder %s17, 1
    %p140 = scmp.ne.s32.totalorder %s135, %s137
    %p141 = scmp.eq.s32.totalorder %s17, 0
    %p142 = por %p140, %p141
    %p143 = scmp.ne.s32.totalorder %s135, %s137
    %p144 = scmp.eq.s32.totalorder %s22, 1
    %p145 = por %p143, %p144
    %p146 = scmp.ne.s32.totalorder %s137, %s138
    %p147 = scmp.eq.s32.totalorder %s22, 0
    %p148 = por %p146, %p147
    %p149 = scmp.ne.s32.totalorder %s137, %s138
    %p150 = scmp.eq.s32.totalorder %s23, 1
    %p151 = por %p149, %p150
    %p153 = scmp.ne.s32.totalorder %s138, %s152
    %p154 = scmp.eq.s32.totalorder %s23, 0
    %p155 = por %p153, %p154
    %s157 = sadd.s32 %s156, 1
    %p160 = scmp.eq.s32.totalorder %s17, 1
    %p161 = scmp.ne.s32.totalorder %s156, %s158
    %p162 = scmp.eq.s32.totalorder %s17, 0
    %p163 = por %p161, %p162
    %p164 = scmp.ne.s32.totalorder %s156, %s158
    %p165 = scmp.eq.s32.totalorder %s22, 1
    %p166 = por %p164, %p165
    %p167 = scmp.ne.s32.totalorder %s158, %s159
    %p168 = scmp.eq.s32.totalorder %s22, 0
    %p169 = por %p167, %p168
    %p170 = scmp.ne.s32.totalorder %s158, %s159
    %p171 = scmp.eq.s32.totalorder %s23, 1
    %p172 = por %p170, %p171
    %p174 = scmp.ne.s32.totalorder %s159, %s173
    %p175 = scmp.eq.s32.totalorder %s23, 0
    %p176 = por %p174, %p175
    %s178 = sadd.s32 %s177, 1
    %p181 = scmp.eq.s32.totalorder %s17, 1
    %p182 = scmp.ne.s32.totalorder %s177, %s179
    %p183 = scmp.eq.s32.totalorder %s17, 0
    %p184 = por %p182, %p183
    %p185 = scmp.ne.s32.totalorder %s177, %s179
    %p186 = scmp.eq.s32.totalorder %s22, 1
    %p187 = por %p185, %p186
    %p188 = scmp.ne.s32.totalorder %s179, %s180
    %p189 = scmp.eq.s32.totalorder %s22, 0
    %p190 = por %p188, %p189
    %p191 = scmp.ne.s32.totalorder %s179, %s180
    %p192 = scmp.eq.s32.totalorder %s23, 1
    %p193 = por %p191, %p192
    %p195 = scmp.ne.s32.totalorder %s180, %s194
    %p196 = scmp.eq.s32.totalorder %s23, 0
    %p197 = por %p195, %p196
    %s199 = sadd.s32 %s198, 1
    %p202 = scmp.eq.s32.totalorder %s17, 1
    %p203 = scmp.ne.s32.totalorder %s198, %s200
    %p204 = scmp.eq.s32.totalorder %s17, 0
    %p205 = por %p203, %p204
    %p206 = scmp.ne.s32.totalorder %s198, %s200
    %p207 = scmp.eq.s32.totalorder %s22, 1
    %p208 = por %p206, %p207
    %p209 = scmp.ne.s32.totalorder %s200, %s201
    %p210 = scmp.eq.s32.totalorder %s22, 0
    %p211 = por %p209, %p210
    %p212 = scmp.ne.s32.totalorder %s200, %s201
    %p213 = scmp.eq.s32.totalorder %s23, 1
    %p214 = por %p212, %p213
    %p216 = scmp.ne.s32.totalorder %s201, %s215
    %p217 = scmp.eq.s32.totalorder %s23, 0
    %p218 = por %p216, %p217
    %s220 = sadd.s32 %s219, 1
    %p223 = scmp.eq.s32.totalorder %s17, 1
    %p224 = scmp.ne.s32.totalorder %s219, %s221
    %p225 = scmp.eq.s32.totalorder %s17, 0
    %p226 = por %p224, %p225
    %p227 = scmp.ne.s32.totalorder %s219, %s221
    %p228 = scmp.eq.s32.totalorder %s22, 1
    %p229 = por %p227, %p228
    %p230 = scmp.ne.s32.totalorder %s221, %s222
    %p231 = scmp.eq.s32.totalorder %s22, 0
    %p232 = por %p230, %p231
    %p233 = scmp.ne.s32.totalorder %s221, %s222
    %p234 = scmp.eq.s32.totalorder %s23, 1
    %p235 = por %p233, %p234
    %p237 = scmp.ne.s32.totalorder %s222, %s236
    %p238 = scmp.eq.s32.totalorder %s23, 0
    %p239 = por %p237, %p238
    %s241 = sadd.s32 %s240, 1
    %p244 = scmp.eq.s32.totalorder %s17, 1
    %p245 = scmp.ne.s32.totalorder %s240, %s242
    %p246 = scmp.eq.s32.totalorder %s17, 0
    %p247 = por %p245, %p246
    %p248 = scmp.ne.s32.totalorder %s240, %s242
    %p249 = scmp.eq.s32.totalorder %s22, 1
    %p250 = por %p248, %p249
    %p251 = scmp.ne.s32.totalorder %s242, %s243
    %p252 = scmp.eq.s32.totalorder %s22, 0
    %p253 = por %p251, %p252
    %p254 = scmp.ne.s32.totalorder %s242, %s243
    %p255 = scmp.eq.s32.totalorder %s23, 1
    %p256 = por %p254, %p255
    %p258 = scmp.ne.s32.totalorder %s243, %s257
    %p259 = scmp.eq.s32.totalorder %s23, 0
    %p260 = por %p258, %p259
    %s261 = ssub.s32 %s17, %s24
    %p262 = scmp.eq.s32.totalorder %s261, 0
    %s264 = sadd.s32 %s263, 1
    %s265 = scalar_select %p262, %s263, %s264
    %p268 = pneg %p262
    %p269 = scmp.eq.s32.totalorder %s17, 1
    %p270 = por %p268, %p269
    %p271 = scmp.ne.s32.totalorder %s263, %s266
    %p272 = scmp.eq.s32.totalorder %s17, 0
    %p273 = por %p271, %p272
    %p274 = scmp.ne.s32.totalorder %s263, %s266
    %p275 = scmp.eq.s32.totalorder %s22, 1
    %p276 = por %p274, %p275
    %p277 = scmp.ne.s32.totalorder %s266, %s267
    %p278 = scmp.eq.s32.totalorder %s22, 0
    %p279 = por %p277, %p278
    %p280 = scmp.ne.s32.totalorder %s266, %s267
    %p281 = scmp.eq.s32.totalorder %s23, 1
    %p282 = por %p280, %p281
    %p284 = scmp.ne.s32.totalorder %s267, %s283
    %p285 = scmp.eq.s32.totalorder %s23, 0
    %p286 = por %p284, %p285
    %p287 = scmp.le.s32.totalorder 1, %s17
    %p288 = scmp.lt.s32.totalorder %s17, 3
    %p289 = pnand %p287, %p288
    %p290 = pneg %p289
    // Predicated region
    $region9: #{ae_forward.1} parent=5 // pred_check
      _
    $region10: #{ae_forward.1} parent=5 // pred_check_branch
      %292 = sbr.rel (%p289) target = $region12
    $region11: #{ae_forward.1} parent=5 // pred_region
      %s293 = ssub.s32 %s17, 1
      // Predicated region
      $region13: #{ae_forward.1} parent=11 // pred_check
        %p294 = pneg %p64
      $region14: #{ae_forward.1} parent=11 // pred_check_branch
        %296 = sbr.rel (%p294) target = $region16
      $region15: #{ae_forward.1} parent=11 // pred_region
        _
      $region16: #{ae_forward.1} parent=11 // pred_fallthru
        _
      // Predicated region
      $region17: #{ae_forward.1} parent=11 // pred_check
        %p297 = pneg %p85
      $region18: #{ae_forward.1} parent=11 // pred_check_branch
        %299 = sbr.rel (%p297) target = $region20
      $region19: #{ae_forward.1} parent=11 // pred_region
        _
      $region20: #{ae_forward.1} parent=11 // pred_fallthru
        _
      // Predicated region
      $region21: #{ae_forward.1} parent=11 // pred_check
        %p300 = pneg %p106
      $region22: #{ae_forward.1} parent=11 // pred_check_branch
        %302 = sbr.rel (%p300) target = $region24
      $region23: #{ae_forward.1} parent=11 // pred_region
        _
      $region24: #{ae_forward.1} parent=11 // pred_fallthru
        _
      // Predicated region
      $region25: #{ae_forward.1} parent=11 // pred_check
        %p303 = pneg %p127
      $region26: #{ae_forward.1} parent=11 // pred_check_branch
        %305 = sbr.rel (%p303) target = $region28
      $region27: #{ae_forward.1} parent=11 // pred_region
        _
      $region28: #{ae_forward.1} parent=11 // pred_fallthru
        _
      // Predicated region
      $region29: #{ae_forward.1} parent=11 // pred_check
        %p306 = pneg %p148
      $region30: #{ae_forward.1} parent=11 // pred_check_branch
        %308 = sbr.rel (%p306) target = $region32
      $region31: #{ae_forward.1} parent=11 // pred_region
        _
      $region32: #{ae_forward.1} parent=11 // pred_fallthru
        _
      // Predicated region
      $region33: #{ae_forward.1} parent=11 // pred_check
        %p309 = pneg %p169
      $region34: #{ae_forward.1} parent=11 // pred_check_branch
        %311 = sbr.rel (%p309) target = $region36
      $region35: #{ae_forward.1} parent=11 // pred_region
        _
      $region36: #{ae_forward.1} parent=11 // pred_fallthru
        _
      // Predicated region
      $region37: #{ae_forward.1} parent=11 // pred_check
        %p312 = pneg %p190
      $region38: #{ae_forward.1} parent=11 // pred_check_branch
        %314 = sbr.rel (%p312) target = $region40
      $region39: #{ae_forward.1} parent=11 // pred_region
        _
      $region40: #{ae_forward.1} parent=11 // pred_fallthru
        _
      // Predicated region
      $region41: #{ae_forward.1} parent=11 // pred_check
        %p315 = pneg %p211
      $region42: #{ae_forward.1} parent=11 // pred_check_branch
        %317 = sbr.rel (%p315) target = $region44
      $region43: #{ae_forward.1} parent=11 // pred_region
        _
      $region44: #{ae_forward.1} parent=11 // pred_fallthru
        _
      // Predicated region
      $region45: #{ae_forward.1} parent=11 // pred_check
        %p318 = pneg %p232
      $region46: #{ae_forward.1} parent=11 // pred_check_branch
        %320 = sbr.rel (%p318) target = $region48
      $region47: #{ae_forward.1} parent=11 // pred_region
        _
      $region48: #{ae_forward.1} parent=11 // pred_fallthru
        _
      // Predicated region
      $region49: #{ae_forward.1} parent=11 // pred_check
        %p321 = pneg %p253
      $region50: #{ae_forward.1} parent=11 // pred_check_branch
        %323 = sbr.rel (%p321) target = $region52
      $region51: #{ae_forward.1} parent=11 // pred_region
        _
      $region52: #{ae_forward.1} parent=11 // pred_fallthru
        _
    $region12: #{ae_forward.1} parent=5 // pred_fallthru
      _
    %p324 = scmp.lt.s32.totalorder %s17, 2
    // Predicated region
    $region53: #{ae_forward.1} parent=5 // pred_check
      %p325 = pneg %p324
    $region54: #{ae_forward.1} parent=5 // pred_check_branch
      %327 = sbr.rel (%p325) target = $region56
    $region55: #{ae_forward.1} parent=5 // pred_region
      // Predicated region
      $region57: #{ae_forward.1} parent=55 // pred_check
        %p328 = pneg %p37
      $region58: #{ae_forward.1} parent=55 // pred_check_branch
        %330 = sbr.rel (%p328) target = $region60
      $region59: #{ae_forward.1} parent=55 // pred_region
        %s331 = smul.u32 16, %s17
        %p332 = scmp.lt.s32.totalorder %s331, 31
        %s333 = scalar_select %p332, %s331, 31
        %s334 = smul.addr %s333, 8
        %s335 = scalar_lea.vmem %s0, %s334
        %s336 = smul.u32 16, %s17
      $region60: #{ae_forward.1} parent=55 // pred_fallthru
        _
    $region56: #{ae_forward.1} parent=5 // pred_fallthru
      _
    %p337 = scmp.le.s32.totalorder 1, %s17
    %p338 = scmp.lt.s32.totalorder %s17, 3
    %p339 = pnand %p337, %p338
    %p340 = pneg %p339
    // Predicated region
    $region61: #{ae_forward.1} parent=5 // pred_check
      _
    $region62: #{ae_forward.1} parent=5 // pred_check_branch
      %342 = sbr.rel (%p339) target = $region64
    $region63: #{ae_forward.1} parent=5 // pred_region
      %s343 = ssub.s32 %s17, 1
      %s344 = smul.u32 16, %s22
      %p345 = scmp.lt.s32.totalorder %s344, 31
      %s346 = scalar_select %p345, %s344, 31
      %s347 = smul.addr %s346, 8
      %s348 = scalar_lea.vmem %s0, %s347
      %p349 = pneg %p43
      %p350 = pneg %p40
      %p351 = pneg %p64
      %p352 = pneg %p61
      %p353 = pneg %p85
      %p354 = pneg %p82
      %p355 = pneg %p106
      %p356 = pneg %p103
      %p357 = pneg %p127
      %p358 = pneg %p124
      %p359 = pneg %p148
      %p360 = pneg %p145
      %p361 = pneg %p169
      %p362 = pneg %p166
      %p363 = pneg %p190
      %p364 = pneg %p187
      %p365 = pneg %p211
      %p366 = pneg %p208
      %p367 = pneg %p232
      %p368 = pneg %p229
      %p369 = pneg %p253
      %p370 = pneg %p250
      %p371 = pneg %p279
      %p372 = pneg %p276
      %s373 = smul.u32 16, %s22
      %p374 = scmp.lt.s32.totalorder %s373, 31
      %s375 = scalar_select %p374, %s373, 31
      %s376 = smul.addr %s375, 8
      %s377 = scalar_lea.vmem %s11, %s376
      %s378 = smul.u32 16, %s22
      %p379 = scmp.lt.s32.totalorder %s378, 31
      %s380 = scalar_select %p379, %s378, 31
      %s381 = smul.addr %s380, 8
      %s382 = scalar_lea.vmem %s0, %s381
      %s383 = smul.u32 16, %s22
      %s384 = smul.u32 16, %s22
      %p385 = scmp.lt.s32.totalorder %s384, 31
      %s386 = scalar_select %p385, %s384, 31
      %s387 = smul.addr %s386, 8
      %s388 = scalar_lea.vmem %s11, %s387
      %s389 = smul.u32 16, %s22
      %v391 = vld [vmem:[%s382] sm:$0xff]
      %v392 = vld [vmem:[%s382 + $0x8] sm:$0xff]
      %v393 = vld [vmem:[%s382 + $0x10] sm:$0xff]
      %v394 = vld [vmem:[%s382 + $0x18] sm:$0xff]
      %v395 = vld [vmem:[%s382 + $0x20] sm:$0xff]
      %v396 = vld [vmem:[%s382 + $0x28] sm:$0xff]
      %v397 = vld [vmem:[%s382 + $0x30] sm:$0xff]
      %v398 = vld [vmem:[%s382 + $0x38] sm:$0xff]
      %v399 = vld [vmem:[%s382 + $0x40] sm:$0xff]
      %v400 = vld [vmem:[%s382 + $0x48] sm:$0xff]
      %v401 = vld [vmem:[%s382 + $0x50] sm:$0xff]
      %v402 = vld [vmem:[%s382 + $0x58] sm:$0xff]
      %v403 = vld [vmem:[%s382 + $0x60] sm:$0xff]
      %v404 = vld [vmem:[%s382 + $0x68] sm:$0xff]
      %v405 = vld [vmem:[%s382 + $0x70] sm:$0xff]
      %v406 = vld [vmem:[%s382 + $0x78] sm:$0xff]
      %v407 = vpack.c.bf16 %v392, %v391
      %v408 = vpack.c.bf16 %v394, %v393
      %v409 = vpack.c.bf16 %v396, %v395
      %v410 = vpack.c.bf16 %v398, %v397
      %v411 = vpack.c.bf16 %v400, %v399
      %v412 = vpack.c.bf16 %v402, %v401
      %v413 = vpack.c.bf16 %v404, %v403
      %v414 = vpack.c.bf16 %v406, %v405
      %v415 = vld [vmem:[%s1] sm:$0xf]
      %v416 = vld [vmem:[%s1 + $0x4] sm:$0xf]
      %v417 = vld [vmem:[%s1 + $0x8] sm:$0xf]
      %v418 = vld [vmem:[%s1 + $0xc] sm:$0xf]
      %v419 = vld [vmem:[%s2] sm:$0x1]
      %v421 = vlaneseq
      %v422 = vshrl.u32 %v421, 7
      %v423 = vsub.s32 0, %v422
      %v424 = vrot.slane %v419, %v423
      %v430 = vunpack.c.l.b16 %v415
      %v431 = vunpack.c.l.b16 %v416
      %v432 = vunpack.c.l.b16 %v417
      %v433 = vunpack.c.l.b16 %v418
      %v434 = vpack.c.b16 %v431, %v430
      %v435 = vpack.c.b16 %v433, %v432
      %vm438 = vcmask 261120
      %v440 = vsel %vm438, %v407, 0
      %v443 = vsel %vm438, %v408, 0
      %v446 = vsel %vm438, %v409, 0
      %v449 = vsel %vm438, %v410, 0
      %v452 = vsel %vm438, %v411, 0
      %v455 = vsel %vm438, %v412, 0
      %v458 = vsel %vm438, %v413, 0
      %v461 = vsel %vm438, %v414, 0
      %463 = vmatprep.subr.bf16.mxu0 0
      %464 = vmatpush1.bf16.msra.mxu0 0
      %465 = vmatprep.subr.bf16.mxu0 0
      %466 = vmatpush1.bf16.msra.mxu0 0
      %467 = vmatprep.subr.bf16.mxu0 0
      %468 = vmatpush1.bf16.msra.mxu0 0
      %469 = vmatprep.subr.bf16.mxu0 0
      %470 = vmatpush1.bf16.msra.mxu0 0
      %471 = vmatprep.subr.bf16.mxu0 0
      %472 = vmatpush1.bf16.msra.mxu0 0
      %473 = vmatprep.subr.bf16.mxu0 0
      %474 = vmatpush1.bf16.msra.mxu0 0
      %475 = vmatprep.subr.bf16.mxu0 0
      %476 = vmatpush1.bf16.msra.mxu0 %v435
      %477 = vmatprep.subr.bf16.mxu0 0
      %478 = vmatpush1.bf16.msra.mxu0 %v434
      %479 = vmatprep.subr.bf16.mxu0 0
      %480 = vmatpush2.bf16.msra.mxu0 0
      %481 = vmatprep.subr.bf16.mxu0 0
      %482 = vmatpush2.bf16.msra.mxu0 0
      %483 = vmatprep.subr.bf16.mxu0 0
      %484 = vmatpush2.bf16.msra.mxu0 0
      %485 = vmatprep.subr.bf16.mxu0 0
      %486 = vmatpush2.bf16.msra.mxu0 0
      %487 = vmatprep.subr.bf16.mxu0 0
      %488 = vmatpush2.bf16.msra.mxu0 0
      %489 = vmatprep.subr.bf16.mxu0 0
      %490 = vmatpush2.bf16.msra.mxu0 0
      %491 = vmatprep.subr.bf16.mxu0 0
      %492 = vmatpush2.bf16.msra.mxu0 0
      %493 = vmatprep.subr.bf16.mxu0 0
      %494 = vmatpush2.bf16.msra.mxu0 0
      %495 = vmatprep.mubr.bf16.mxu0 0
      %496 = vmatmul.mubr.bf16.gmra.mxu0 %v440
      %v497 = vpop.f32.mrf.mxu0
      %v498 = vadd.f32 %v424, %v497
      %v499 = vpop.f32.mrf.mxu0
      %v500 = vpop.f32.mrf.mxu0
      %v501 = vadd.f32 %v424, %v500
      %v502 = vpop.f32.mrf.mxu0
      %503 = vmatprep.mubr.bf16.mxu0 0
      %504 = vmatmul.mubr.bf16.gmra.mxu0 %v443
      %v505 = vpop.f32.mrf.mxu0
      %v506 = vadd.f32 %v424, %v505
      %v507 = vpop.f32.mrf.mxu0
      %v508 = vpop.f32.mrf.mxu0
      %v509 = vadd.f32 %v424, %v508
      %v510 = vpop.f32.mrf.mxu0
      %511 = vmatprep.mubr.bf16.mxu0 0
      %512 = vmatmul.mubr.bf16.gmra.mxu0 %v446
      %v513 = vpop.f32.mrf.mxu0
      %v514 = vadd.f32 %v424, %v513
      %v515 = vpop.f32.mrf.mxu0
      %v516 = vpop.f32.mrf.mxu0
      %v517 = vadd.f32 %v424, %v516
      %v518 = vpop.f32.mrf.mxu0
      %519 = vmatprep.mubr.bf16.mxu0 0
      %520 = vmatmul.mubr.bf16.gmra.mxu0 %v449
      %v521 = vpop.f32.mrf.mxu0
      %v522 = vadd.f32 %v424, %v521
      %v523 = vpop.f32.mrf.mxu0
      %v524 = vpop.f32.mrf.mxu0
      %v525 = vadd.f32 %v424, %v524
      %v526 = vpop.f32.mrf.mxu0
      %527 = vmatprep.mubr.bf16.mxu0 0
      %528 = vmatmul.mubr.bf16.gmra.mxu0 %v452
      %v529 = vpop.f32.mrf.mxu0
      %v530 = vadd.f32 %v424, %v529
      %v531 = vpop.f32.mrf.mxu0
      %v532 = vpop.f32.mrf.mxu0
      %v533 = vadd.f32 %v424, %v532
      %v534 = vpop.f32.mrf.mxu0
      %535 = vmatprep.mubr.bf16.mxu0 0
      %536 = vmatmul.mubr.bf16.gmra.mxu0 %v455
      %v537 = vpop.f32.mrf.mxu0
      %v538 = vadd.f32 %v424, %v537
      %v539 = vpop.f32.mrf.mxu0
      %v540 = vpop.f32.mrf.mxu0
      %v541 = vadd.f32 %v424, %v540
      %v542 = vpop.f32.mrf.mxu0
      %543 = vmatprep.mubr.bf16.mxu0 0
      %544 = vmatmul.mubr.bf16.gmra.mxu0 %v458
      %v545 = vpop.f32.mrf.mxu0
      %v546 = vadd.f32 %v424, %v545
      %v547 = vpop.f32.mrf.mxu0
      %v548 = vpop.f32.mrf.mxu0
      %v549 = vadd.f32 %v424, %v548
      %v550 = vpop.f32.mrf.mxu0
      %551 = vmatprep.mubr.bf16.mxu0 0
      %552 = vmatmul.mubr.bf16.gmra.mxu0 %v461
      %v553 = vpop.f32.mrf.mxu0
      %v554 = vadd.f32 %v424, %v553
      %v555 = vpop.f32.mrf.mxu0
      %v556 = vpop.f32.mrf.mxu0
      %v557 = vadd.f32 %v424, %v556
      %v558 = vpop.f32.mrf.mxu0
      %559 = vdwg.mxu0
      %v560 = vmax.f32 %v498, 0.0
      %v561 = vmax.f32 %v501, 0.0
      %v562 = vmax.f32 %v506, 0.0
      %v563 = vmax.f32 %v509, 0.0
      %v564 = vmax.f32 %v514, 0.0
      %v565 = vmax.f32 %v517, 0.0
      %v566 = vmax.f32 %v522, 0.0
      %v567 = vmax.f32 %v525, 0.0
      %v568 = vmax.f32 %v530, 0.0
      %v569 = vmax.f32 %v533, 0.0
      %v570 = vmax.f32 %v538, 0.0
      %v571 = vmax.f32 %v541, 0.0
      %v572 = vmax.f32 %v546, 0.0
      %v573 = vmax.f32 %v549, 0.0
      %v574 = vmax.f32 %v554, 0.0
      %v575 = vmax.f32 %v557, 0.0
      %v576 = vpack.c.bf16 %v561, %v560
      %v577 = vpack.c.bf16 %v563, %v562
      %v578 = vpack.c.bf16 %v565, %v564
      %v579 = vpack.c.bf16 %v567, %v566
      %v580 = vpack.c.bf16 %v569, %v568
      %v581 = vpack.c.bf16 %v571, %v570
      %v582 = vpack.c.bf16 %v573, %v572
      %v583 = vpack.c.bf16 %v575, %v574
      %v584 = vld [vmem:[%s3] sm:$0xf]
      %v585 = vld [vmem:[%s3 + $0x4] sm:$0xf]
      %v586 = vld [vmem:[%s3 + $0x8] sm:$0xf]
      %v587 = vld [vmem:[%s3 + $0xc] sm:$0xf]
      %v588 = vld [vmem:[%s3 + $0x10] sm:$0xf]
      %v589 = vld [vmem:[%s3 + $0x14] sm:$0xf]
      %v590 = vld [vmem:[%s3 + $0x18] sm:$0xf]
      %v591 = vld [vmem:[%s3 + $0x1c] sm:$0xf]
      %v592 = vld [vmem:[%s3 + $0x20] sm:$0xf]
      %v593 = vld [vmem:[%s3 + $0x24] sm:$0xf]
      %v594 = vld [vmem:[%s3 + $0x28] sm:$0xf]
      %v595 = vld [vmem:[%s3 + $0x2c] sm:$0xf]
      %v596 = vld [vmem:[%s3 + $0x30] sm:$0xf]
      %v597 = vld [vmem:[%s3 + $0x34] sm:$0xf]
      %v598 = vld [vmem:[%s3 + $0x38] sm:$0xf]
      %v599 = vld [vmem:[%s3 + $0x3c] sm:$0xf]
      %v600 = vld [vmem:[%s4] sm:$0x1]
      %v602 = vlaneseq
      %v603 = vshrl.u32 %v602, 7
      %v604 = vsub.s32 0, %v603
      %v605 = vrot.slane %v600, %v604
      %v623 = vunpack.c.l.b16 %v584
      %v624 = vunpack.c.l.b16 %v585
      %v625 = vunpack.c.l.b16 %v586
      %v626 = vunpack.c.l.b16 %v587
      %v627 = vunpack.c.l.b16 %v588
      %v628 = vunpack.c.l.b16 %v589
      %v629 = vunpack.c.l.b16 %v590
      %v630 = vunpack.c.l.b16 %v591
      %v631 = vunpack.c.l.b16 %v592
      %v632 = vunpack.c.l.b16 %v593
      %v633 = vunpack.c.l.b16 %v594
      %v634 = vunpack.c.l.b16 %v595
      %v635 = vunpack.c.l.b16 %v596
      %v636 = vunpack.c.l.b16 %v597
      %v637 = vunpack.c.l.b16 %v598
      %v638 = vunpack.c.l.b16 %v599
      %v639 = vpack.c.b16 %v624, %v623
      %v640 = vpack.c.b16 %v626, %v625
      %v641 = vpack.c.b16 %v628, %v627
      %v642 = vpack.c.b16 %v630, %v629
      %v643 = vpack.c.b16 %v632, %v631
      %v644 = vpack.c.b16 %v634, %v633
      %v645 = vpack.c.b16 %v636, %v635
      %v646 = vpack.c.b16 %v638, %v637
      %655 = vmatprep.subr.bf16.mxu0 0
      %656 = vmatpush1.bf16.msra.mxu0 %v646
      %657 = vmatprep.subr.bf16.mxu0 0
      %658 = vmatpush1.bf16.msra.mxu0 %v645
      %659 = vmatprep.subr.bf16.mxu0 0
      %660 = vmatpush1.bf16.msra.mxu0 %v644
      %661 = vmatprep.subr.bf16.mxu0 0
      %662 = vmatpush1.bf16.msra.mxu0 %v643
      %663 = vmatprep.subr.bf16.mxu0 0
      %664 = vmatpush1.bf16.msra.mxu0 %v642
      %665 = vmatprep.subr.bf16.mxu0 0
      %666 = vmatpush1.bf16.msra.mxu0 %v641
      %667 = vmatprep.subr.bf16.mxu0 0
      %668 = vmatpush1.bf16.msra.mxu0 %v640
      %669 = vmatprep.subr.bf16.mxu0 0
      %670 = vmatpush1.bf16.msra.mxu0 %v639
      %671 = vmatprep.subr.bf16.mxu0 0
      %672 = vmatpush2.bf16.msra.mxu0 0
      %673 = vmatprep.subr.bf16.mxu0 0
      %674 = vmatpush2.bf16.msra.mxu0 0
      %675 = vmatprep.subr.bf16.mxu0 0
      %676 = vmatpush2.bf16.msra.mxu0 0
      %677 = vmatprep.subr.bf16.mxu0 0
      %678 = vmatpush2.bf16.msra.mxu0 0
      %679 = vmatprep.subr.bf16.mxu0 0
      %680 = vmatpush2.bf16.msra.mxu0 0
      %681 = vmatprep.subr.bf16.mxu0 0
      %682 = vmatpush2.bf16.msra.mxu0 0
      %683 = vmatprep.subr.bf16.mxu0 0
      %684 = vmatpush2.bf16.msra.mxu0 0
      %685 = vmatprep.subr.bf16.mxu0 0
      %686 = vmatpush2.bf16.msra.mxu0 0
      %687 = vmatprep.mubr.bf16.mxu0 0
      %688 = vmatmul.mubr.bf16.gmra.mxu0 %v576
      %v689 = vpop.f32.mrf.mxu0
      %v690 = vadd.f32 %v605, %v689
      %v691 = vpop.f32.mrf.mxu0
      %v692 = vpop.f32.mrf.mxu0
      %v693 = vadd.f32 %v605, %v692
      %v694 = vpop.f32.mrf.mxu0
      %695 = vmatprep.mubr.bf16.mxu0 0
      %696 = vmatmul.mubr.bf16.gmra.mxu0 %v577
      %v697 = vpop.f32.mrf.mxu0
      %v698 = vadd.f32 %v605, %v697
      %v699 = vpop.f32.mrf.mxu0
      %v700 = vpop.f32.mrf.mxu0
      %v701 = vadd.f32 %v605, %v700
      %v702 = vpop.f32.mrf.mxu0
      %703 = vmatprep.mubr.bf16.mxu0 0
      %704 = vmatmul.mubr.bf16.gmra.mxu0 %v578
      %v705 = vpop.f32.mrf.mxu0
      %v706 = vadd.f32 %v605, %v705
      %v707 = vpop.f32.mrf.mxu0
      %v708 = vpop.f32.mrf.mxu0
      %v709 = vadd.f32 %v605, %v708
      %v710 = vpop.f32.mrf.mxu0
      %711 = vmatprep.mubr.bf16.mxu0 0
      %712 = vmatmul.mubr.bf16.gmra.mxu0 %v579
      %v713 = vpop.f32.mrf.mxu0
      %v714 = vadd.f32 %v605, %v713
      %v715 = vpop.f32.mrf.mxu0
      %v716 = vpop.f32.mrf.mxu0
      %v717 = vadd.f32 %v605, %v716
      %v718 = vpop.f32.mrf.mxu0
      %719 = vmatprep.mubr.bf16.mxu0 0
      %720 = vmatmul.mubr.bf16.gmra.mxu0 %v580
      %v721 = vpop.f32.mrf.mxu0
      %v722 = vadd.f32 %v605, %v721
      %v723 = vpop.f32.mrf.mxu0
      %v724 = vpop.f32.mrf.mxu0
      %v725 = vadd.f32 %v605, %v724
      %v726 = vpop.f32.mrf.mxu0
      %727 = vmatprep.mubr.bf16.mxu0 0
      %728 = vmatmul.mubr.bf16.gmra.mxu0 %v581
      %v729 = vpop.f32.mrf.mxu0
      %v730 = vadd.f32 %v605, %v729
      %v731 = vpop.f32.mrf.mxu0
      %v732 = vpop.f32.mrf.mxu0
      %v733 = vadd.f32 %v605, %v732
      %v734 = vpop.f32.mrf.mxu0
      %735 = vmatprep.mubr.bf16.mxu0 0
      %736 = vmatmul.mubr.bf16.gmra.mxu0 %v582
      %v737 = vpop.f32.mrf.mxu0
      %v738 = vadd.f32 %v605, %v737
      %v739 = vpop.f32.mrf.mxu0
      %v740 = vpop.f32.mrf.mxu0
      %v741 = vadd.f32 %v605, %v740
      %v742 = vpop.f32.mrf.mxu0
      %743 = vmatprep.mubr.bf16.mxu0 0
      %744 = vmatmul.mubr.bf16.gmra.mxu0 %v583
      %v745 = vpop.f32.mrf.mxu0
      %v746 = vadd.f32 %v605, %v745
      %v747 = vpop.f32.mrf.mxu0
      %v748 = vpop.f32.mrf.mxu0
      %v749 = vadd.f32 %v605, %v748
      %v750 = vpop.f32.mrf.mxu0
      %751 = vdwg.mxu0
      %v752 = vmul.f32 %v690, %v690
      %v753 = vmul.f32 %v693, %v693
      %v754 = vmul.f32 %v698, %v698
      %v755 = vmul.f32 %v701, %v701
      %v756 = vmul.f32 %v706, %v706
      %v757 = vmul.f32 %v709, %v709
      %v758 = vmul.f32 %v714, %v714
      %v759 = vmul.f32 %v717, %v717
      %v760 = vmul.f32 %v722, %v722
      %v761 = vmul.f32 %v725, %v725
      %v762 = vmul.f32 %v730, %v730
      %v763 = vmul.f32 %v733, %v733
      %v764 = vmul.f32 %v738, %v738
      %v765 = vmul.f32 %v741, %v741
      %v766 = vmul.f32 %v746, %v746
      %v767 = vmul.f32 %v749, %v749
      %768 = vadd.xlane.f32.xlu0 %v752
      %v769 = vpop.xlane.xlu0 %768
      %770 = vadd.xlane.f32.xlu0 %v753
      %v771 = vpop.xlane.xlu0 %770
      %772 = vadd.xlane.f32.xlu0 %v754
      %v773 = vpop.xlane.xlu0 %772
      %774 = vadd.xlane.f32.xlu0 %v755
      %v775 = vpop.xlane.xlu0 %774
      %776 = vadd.xlane.f32.xlu0 %v756
      %v777 = vpop.xlane.xlu0 %776
      %778 = vadd.xlane.f32.xlu0 %v757
      %v779 = vpop.xlane.xlu0 %778
      %780 = vadd.xlane.f32.xlu0 %v758
      %v781 = vpop.xlane.xlu0 %780
      %782 = vadd.xlane.f32.xlu0 %v759
      %v783 = vpop.xlane.xlu0 %782
      %784 = vadd.xlane.f32.xlu0 %v760
      %v785 = vpop.xlane.xlu0 %784
      %786 = vadd.xlane.f32.xlu0 %v761
      %v787 = vpop.xlane.xlu0 %786
      %788 = vadd.xlane.f32.xlu0 %v762
      %v789 = vpop.xlane.xlu0 %788
      %790 = vadd.xlane.f32.xlu0 %v763
      %v791 = vpop.xlane.xlu0 %790
      %792 = vadd.xlane.f32.xlu0 %v764
      %v793 = vpop.xlane.xlu0 %792
      %794 = vadd.xlane.f32.xlu0 %v765
      %v795 = vpop.xlane.xlu0 %794
      %796 = vadd.xlane.f32.xlu0 %v766
      %v797 = vpop.xlane.xlu0 %796
      %798 = vadd.xlane.f32.xlu0 %v767
      %v799 = vpop.xlane.xlu0 %798
      %v800 = vmax.f32 %v769, 1e-24
      %v801 = vmax.f32 %v771, 1e-24
      %v802 = vmax.f32 %v773, 1e-24
      %v803 = vmax.f32 %v775, 1e-24
      %v804 = vmax.f32 %v777, 1e-24
      %v805 = vmax.f32 %v779, 1e-24
      %v806 = vmax.f32 %v781, 1e-24
      %v807 = vmax.f32 %v783, 1e-24
      %v808 = vmax.f32 %v785, 1e-24
      %v809 = vmax.f32 %v787, 1e-24
      %v810 = vmax.f32 %v789, 1e-24
      %v811 = vmax.f32 %v791, 1e-24
      %v812 = vmax.f32 %v793, 1e-24
      %v813 = vmax.f32 %v795, 1e-24
      %v814 = vmax.f32 %v797, 1e-24
      %v815 = vmax.f32 %v799, 1e-24
      %v816 = vrsqrt.pop %v800
      %v817 = vrsqrt.pop %v801
      %v818 = vrsqrt.pop %v802
      %v819 = vrsqrt.pop %v803
      %v820 = vrsqrt.pop %v804
      %v821 = vrsqrt.pop %v805
      %v822 = vrsqrt.pop %v806
      %v823 = vrsqrt.pop %v807
      %v824 = vrsqrt.pop %v808
      %v825 = vrsqrt.pop %v809
      %v826 = vrsqrt.pop %v810
      %v827 = vrsqrt.pop %v811
      %v828 = vrsqrt.pop %v812
      %v829 = vrsqrt.pop %v813
      %v830 = vrsqrt.pop %v814
      %v831 = vrsqrt.pop %v815
      %v832 = vmul.f32 %v690, %v816
      %v833 = vmul.f32 %v693, %v817
      %v834 = vmul.f32 %v698, %v818
      %v835 = vmul.f32 %v701, %v819
      %v836 = vmul.f32 %v706, %v820
      %v837 = vmul.f32 %v709, %v821
      %v838 = vmul.f32 %v714, %v822
      %v839 = vmul.f32 %v717, %v823
      %v840 = vmul.f32 %v722, %v824
      %v841 = vmul.f32 %v725, %v825
      %v842 = vmul.f32 %v730, %v826
      %v843 = vmul.f32 %v733, %v827
      %v844 = vmul.f32 %v738, %v828
      %v845 = vmul.f32 %v741, %v829
      %v846 = vmul.f32 %v746, %v830
      %v847 = vmul.f32 %v749, %v831
      %v848 = vpack.c.bf16 %v833, %v832
      %v849 = vpack.c.bf16 %v835, %v834
      %v850 = vpack.c.bf16 %v837, %v836
      %v851 = vpack.c.bf16 %v839, %v838
      %v852 = vpack.c.bf16 %v841, %v840
      %v853 = vpack.c.bf16 %v843, %v842
      %v854 = vpack.c.bf16 %v845, %v844
      %v855 = vpack.c.bf16 %v847, %v846
      %v856 = vld [vmem:[%s5] sm:$0xf]
      %v857 = vld [vmem:[%s5 + $0x4] sm:$0xf]
      %v858 = vld [vmem:[%s5 + $0x8] sm:$0xf]
      %v859 = vld [vmem:[%s5 + $0xc] sm:$0xf]
      %v860 = vld [vmem:[%s5 + $0x10] sm:$0xf]
      %v861 = vld [vmem:[%s5 + $0x14] sm:$0xf]
      %v862 = vld [vmem:[%s5 + $0x18] sm:$0xf]
      %v863 = vld [vmem:[%s5 + $0x1c] sm:$0xf]
      %v864 = vld [vmem:[%s5 + $0x20] sm:$0xf]
      %v865 = vld [vmem:[%s5 + $0x24] sm:$0xf]
      %v866 = vld [vmem:[%s5 + $0x28] sm:$0xf]
      %v867 = vld [vmem:[%s5 + $0x2c] sm:$0xf]
      %v868 = vld [vmem:[%s5 + $0x30] sm:$0xf]
      %v869 = vld [vmem:[%s5 + $0x34] sm:$0xf]
      %v870 = vld [vmem:[%s5 + $0x38] sm:$0xf]
      %v871 = vld [vmem:[%s5 + $0x3c] sm:$0xf]
      %v872 = vld [vmem:[%s6] sm:$0x1]
      %v874 = vlaneseq
      %v875 = vshrl.u32 %v874, 7
      %v876 = vsub.s32 0, %v875
      %v877 = vrot.slane %v872, %v876
      %v895 = vunpack.c.l.b16 %v856
      %v896 = vunpack.c.l.b16 %v857
      %v897 = vunpack.c.l.b16 %v858
      %v898 = vunpack.c.l.b16 %v859
      %v899 = vunpack.c.l.b16 %v860
      %v900 = vunpack.c.l.b16 %v861
      %v901 = vunpack.c.l.b16 %v862
      %v902 = vunpack.c.l.b16 %v863
      %v903 = vunpack.c.l.b16 %v864
      %v904 = vunpack.c.l.b16 %v865
      %v905 = vunpack.c.l.b16 %v866
      %v906 = vunpack.c.l.b16 %v867
      %v907 = vunpack.c.l.b16 %v868
      %v908 = vunpack.c.l.b16 %v869
      %v909 = vunpack.c.l.b16 %v870
      %v910 = vunpack.c.l.b16 %v871
      %v911 = vpack.c.b16 %v896, %v895
      %v912 = vpack.c.b16 %v898, %v897
      %v913 = vpack.c.b16 %v900, %v899
      %v914 = vpack.c.b16 %v902, %v901
      %v915 = vpack.c.b16 %v904, %v903
      %v916 = vpack.c.b16 %v906, %v905
      %v917 = vpack.c.b16 %v908, %v907
      %v918 = vpack.c.b16 %v910, %v909
      %927 = vmatprep.subr.bf16.mxu0 0
      %928 = vmatpush1.bf16.msra.mxu0 %v918
      %929 = vmatprep.subr.bf16.mxu0 0
      %930 = vmatpush1.bf16.msra.mxu0 %v917
      %931 = vmatprep.subr.bf16.mxu0 0
      %932 = vmatpush1.bf16.msra.mxu0 %v916
      %933 = vmatprep.subr.bf16.mxu0 0
      %934 = vmatpush1.bf16.msra.mxu0 %v915
      %935 = vmatprep.subr.bf16.mxu0 0
      %936 = vmatpush1.bf16.msra.mxu0 %v914
      %937 = vmatprep.subr.bf16.mxu0 0
      %938 = vmatpush1.bf16.msra.mxu0 %v913
      %939 = vmatprep.subr.bf16.mxu0 0
      %940 = vmatpush1.bf16.msra.mxu0 %v912
      %941 = vmatprep.subr.bf16.mxu0 0
      %942 = vmatpush1.bf16.msra.mxu0 %v911
      %943 = vmatprep.subr.bf16.mxu0 0
      %944 = vmatpush2.bf16.msra.mxu0 0
      %945 = vmatprep.subr.bf16.mxu0 0
      %946 = vmatpush2.bf16.msra.mxu0 0
      %947 = vmatprep.subr.bf16.mxu0 0
      %948 = vmatpush2.bf16.msra.mxu0 0
      %949 = vmatprep.subr.bf16.mxu0 0
      %950 = vmatpush2.bf16.msra.mxu0 0
      %951 = vmatprep.subr.bf16.mxu0 0
      %952 = vmatpush2.bf16.msra.mxu0 0
      %953 = vmatprep.subr.bf16.mxu0 0
      %954 = vmatpush2.bf16.msra.mxu0 0
      %955 = vmatprep.subr.bf16.mxu0 0
      %956 = vmatpush2.bf16.msra.mxu0 0
      %957 = vmatprep.subr.bf16.mxu0 0
      %958 = vmatpush2.bf16.msra.mxu0 0
      %959 = vmatprep.mubr.bf16.mxu0 0
      %960 = vmatmul.mubr.bf16.gmra.mxu0 %v848
      %v961 = vpop.f32.mrf.mxu0
      %v962 = vadd.f32 %v877, %v961
      %v963 = vpop.f32.mrf.mxu0
      %v964 = vpop.f32.mrf.mxu0
      %v965 = vadd.f32 %v877, %v964
      %v966 = vpop.f32.mrf.mxu0
      %967 = vmatprep.mubr.bf16.mxu0 0
      %968 = vmatmul.mubr.bf16.gmra.mxu0 %v849
      %v969 = vpop.f32.mrf.mxu0
      %v970 = vadd.f32 %v877, %v969
      %v971 = vpop.f32.mrf.mxu0
      %v972 = vpop.f32.mrf.mxu0
      %v973 = vadd.f32 %v877, %v972
      %v974 = vpop.f32.mrf.mxu0
      %975 = vmatprep.mubr.bf16.mxu0 0
      %976 = vmatmul.mubr.bf16.gmra.mxu0 %v850
      %v977 = vpop.f32.mrf.mxu0
      %v978 = vadd.f32 %v877, %v977
      %v979 = vpop.f32.mrf.mxu0
      %v980 = vpop.f32.mrf.mxu0
      %v981 = vadd.f32 %v877, %v980
      %v982 = vpop.f32.mrf.mxu0
      %983 = vmatprep.mubr.bf16.mxu0 0
      %984 = vmatmul.mubr.bf16.gmra.mxu0 %v851
      %v985 = vpop.f32.mrf.mxu0
      %v986 = vadd.f32 %v877, %v985
      %v987 = vpop.f32.mrf.mxu0
      %v988 = vpop.f32.mrf.mxu0
      %v989 = vadd.f32 %v877, %v988
      %v990 = vpop.f32.mrf.mxu0
      %991 = vmatprep.mubr.bf16.mxu0 0
      %992 = vmatmul.mubr.bf16.gmra.mxu0 %v852
      %v993 = vpop.f32.mrf.mxu0
      %v994 = vadd.f32 %v877, %v993
      %v995 = vpop.f32.mrf.mxu0
      %v996 = vpop.f32.mrf.mxu0
      %v997 = vadd.f32 %v877, %v996
      %v998 = vpop.f32.mrf.mxu0
      %999 = vmatprep.mubr.bf16.mxu0 0
      %1000 = vmatmul.mubr.bf16.gmra.mxu0 %v853
      %v1001 = vpop.f32.mrf.mxu0
      %v1002 = vadd.f32 %v877, %v1001
      %v1003 = vpop.f32.mrf.mxu0
      %v1004 = vpop.f32.mrf.mxu0
      %v1005 = vadd.f32 %v877, %v1004
      %v1006 = vpop.f32.mrf.mxu0
      %1007 = vmatprep.mubr.bf16.mxu0 0
      %1008 = vmatmul.mubr.bf16.gmra.mxu0 %v854
      %v1009 = vpop.f32.mrf.mxu0
      %v1010 = vadd.f32 %v877, %v1009
      %v1011 = vpop.f32.mrf.mxu0
      %v1012 = vpop.f32.mrf.mxu0
      %v1013 = vadd.f32 %v877, %v1012
      %v1014 = vpop.f32.mrf.mxu0
      %1015 = vmatprep.mubr.bf16.mxu0 0
      %1016 = vmatmul.mubr.bf16.gmra.mxu0 %v855
      %v1017 = vpop.f32.mrf.mxu0
      %v1018 = vadd.f32 %v877, %v1017
      %v1019 = vpop.f32.mrf.mxu0
      %v1020 = vpop.f32.mrf.mxu0
      %v1021 = vadd.f32 %v877, %v1020
      %v1022 = vpop.f32.mrf.mxu0
      %1023 = vdwg.mxu0
      %v1024 = vmax.f32 %v962, 0.0
      %v1025 = vmax.f32 %v965, 0.0
      %v1026 = vmax.f32 %v970, 0.0
      %v1027 = vmax.f32 %v973, 0.0
      %v1028 = vmax.f32 %v978, 0.0
      %v1029 = vmax.f32 %v981, 0.0
      %v1030 = vmax.f32 %v986, 0.0
      %v1031 = vmax.f32 %v989, 0.0
      %v1032 = vmax.f32 %v994, 0.0
      %v1033 = vmax.f32 %v997, 0.0
      %v1034 = vmax.f32 %v1002, 0.0
      %v1035 = vmax.f32 %v1005, 0.0
      %v1036 = vmax.f32 %v1010, 0.0
      %v1037 = vmax.f32 %v1013, 0.0
      %v1038 = vmax.f32 %v1018, 0.0
      %v1039 = vmax.f32 %v1021, 0.0
      %v1040 = vpack.c.bf16 %v1025, %v1024
      %v1041 = vpack.c.bf16 %v1027, %v1026
      %v1042 = vpack.c.bf16 %v1029, %v1028
      %v1043 = vpack.c.bf16 %v1031, %v1030
      %v1044 = vpack.c.bf16 %v1033, %v1032
      %v1045 = vpack.c.bf16 %v1035, %v1034
      %v1046 = vpack.c.bf16 %v1037, %v1036
      %v1047 = vpack.c.bf16 %v1039, %v1038
      %v1048 = vld [vmem:[%s7] sm:$0xf]
      %v1049 = vld [vmem:[%s7 + $0x4] sm:$0xf]
      %v1050 = vld [vmem:[%s7 + $0x8] sm:$0xf]
      %v1051 = vld [vmem:[%s7 + $0xc] sm:$0xf]
      %v1052 = vld [vmem:[%s7 + $0x10] sm:$0xf]
      %v1053 = vld [vmem:[%s7 + $0x14] sm:$0xf]
      %v1054 = vld [vmem:[%s7 + $0x18] sm:$0xf]
      %v1055 = vld [vmem:[%s7 + $0x1c] sm:$0xf]
      %v1056 = vld [vmem:[%s7 + $0x20] sm:$0xf]
      %v1057 = vld [vmem:[%s7 + $0x24] sm:$0xf]
      %v1058 = vld [vmem:[%s7 + $0x28] sm:$0xf]
      %v1059 = vld [vmem:[%s7 + $0x2c] sm:$0xf]
      %v1060 = vld [vmem:[%s7 + $0x30] sm:$0xf]
      %v1061 = vld [vmem:[%s7 + $0x34] sm:$0xf]
      %v1062 = vld [vmem:[%s7 + $0x38] sm:$0xf]
      %v1063 = vld [vmem:[%s7 + $0x3c] sm:$0xf]
      %v1064 = vld [vmem:[%s8] sm:$0x1]
      %v1066 = vlaneseq
      %v1067 = vshrl.u32 %v1066, 7
      %v1068 = vsub.s32 0, %v1067
      %v1069 = vrot.slane %v1064, %v1068
      %v1087 = vunpack.c.l.b16 %v1048
      %v1088 = vunpack.c.l.b16 %v1049
      %v1089 = vunpack.c.l.b16 %v1050
      %v1090 = vunpack.c.l.b16 %v1051
      %v1091 = vunpack.c.l.b16 %v1052
      %v1092 = vunpack.c.l.b16 %v1053
      %v1093 = vunpack.c.l.b16 %v1054
      %v1094 = vunpack.c.l.b16 %v1055
      %v1095 = vunpack.c.l.b16 %v1056
      %v1096 = vunpack.c.l.b16 %v1057
      %v1097 = vunpack.c.l.b16 %v1058
      %v1098 = vunpack.c.l.b16 %v1059
      %v1099 = vunpack.c.l.b16 %v1060
      %v1100 = vunpack.c.l.b16 %v1061
      %v1101 = vunpack.c.l.b16 %v1062
      %v1102 = vunpack.c.l.b16 %v1063
      %v1103 = vpack.c.b16 %v1088, %v1087
      %v1104 = vpack.c.b16 %v1090, %v1089
      %v1105 = vpack.c.b16 %v1092, %v1091
      %v1106 = vpack.c.b16 %v1094, %v1093
      %v1107 = vpack.c.b16 %v1096, %v1095
      %v1108 = vpack.c.b16 %v1098, %v1097
      %v1109 = vpack.c.b16 %v1100, %v1099
      %v1110 = vpack.c.b16 %v1102, %v1101
      %1119 = vmatprep.subr.bf16.mxu0 0
      %1120 = vmatpush1.bf16.msra.mxu0 %v1110
      %1121 = vmatprep.subr.bf16.mxu0 0
      %1122 = vmatpush1.bf16.msra.mxu0 %v1109
      %1123 = vmatprep.subr.bf16.mxu0 0
      %1124 = vmatpush1.bf16.msra.mxu0 %v1108
      %1125 = vmatprep.subr.bf16.mxu0 0
      %1126 = vmatpush1.bf16.msra.mxu0 %v1107
      %1127 = vmatprep.subr.bf16.mxu0 0
      %1128 = vmatpush1.bf16.msra.mxu0 %v1106
      %1129 = vmatprep.subr.bf16.mxu0 0
      %1130 = vmatpush1.bf16.msra.mxu0 %v1105
      %1131 = vmatprep.subr.bf16.mxu0 0
      %1132 = vmatpush1.bf16.msra.mxu0 %v1104
      %1133 = vmatprep.subr.bf16.mxu0 0
      %1134 = vmatpush1.bf16.msra.mxu0 %v1103
      %1135 = vmatprep.subr.bf16.mxu0 0
      %1136 = vmatpush2.bf16.msra.mxu0 0
      %1137 = vmatprep.subr.bf16.mxu0 0
      %1138 = vmatpush2.bf16.msra.mxu0 0
      %1139 = vmatprep.subr.bf16.mxu0 0
      %1140 = vmatpush2.bf16.msra.mxu0 0
      %1141 = vmatprep.subr.bf16.mxu0 0
      %1142 = vmatpush2.bf16.msra.mxu0 0
      %1143 = vmatprep.subr.bf16.mxu0 0
      %1144 = vmatpush2.bf16.msra.mxu0 0
      %1145 = vmatprep.subr.bf16.mxu0 0
      %1146 = vmatpush2.bf16.msra.mxu0 0
      %1147 = vmatprep.subr.bf16.mxu0 0
      %1148 = vmatpush2.bf16.msra.mxu0 0
      %1149 = vmatprep.subr.bf16.mxu0 0
      %1150 = vmatpush2.bf16.msra.mxu0 0
      %1151 = vmatprep.mubr.bf16.mxu0 0
      %1152 = vmatmul.mubr.bf16.gmra.mxu0 %v1040
      %v1153 = vpop.f32.mrf.mxu0
      %v1154 = vadd.f32 %v1069, %v1153
      %v1155 = vpop.f32.mrf.mxu0
      %v1156 = vpop.f32.mrf.mxu0
      %v1157 = vadd.f32 %v1069, %v1156
      %v1158 = vpop.f32.mrf.mxu0
      %1159 = vmatprep.mubr.bf16.mxu0 0
      %1160 = vmatmul.mubr.bf16.gmra.mxu0 %v1041
      %v1161 = vpop.f32.mrf.mxu0
      %v1162 = vadd.f32 %v1069, %v1161
      %v1163 = vpop.f32.mrf.mxu0
      %v1164 = vpop.f32.mrf.mxu0
      %v1165 = vadd.f32 %v1069, %v1164
      %v1166 = vpop.f32.mrf.mxu0
      %1167 = vmatprep.mubr.bf16.mxu0 0
      %1168 = vmatmul.mubr.bf16.gmra.mxu0 %v1042
      %v1169 = vpop.f32.mrf.mxu0
      %v1170 = vadd.f32 %v1069, %v1169
      %v1171 = vpop.f32.mrf.mxu0
      %v1172 = vpop.f32.mrf.mxu0
      %v1173 = vadd.f32 %v1069, %v1172
      %v1174 = vpop.f32.mrf.mxu0
      %1175 = vmatprep.mubr.bf16.mxu0 0
      %1176 = vmatmul.mubr.bf16.gmra.mxu0 %v1043
      %v1177 = vpop.f32.mrf.mxu0
      %v1178 = vadd.f32 %v1069, %v1177
      %v1179 = vpop.f32.mrf.mxu0
      %v1180 = vpop.f32.mrf.mxu0
      %v1181 = vadd.f32 %v1069, %v1180
      %v1182 = vpop.f32.mrf.mxu0
      %1183 = vmatprep.mubr.bf16.mxu0 0
      %1184 = vmatmul.mubr.bf16.gmra.mxu0 %v1044
      %v1185 = vpop.f32.mrf.mxu0
      %v1186 = vadd.f32 %v1069, %v1185
      %v1187 = vpop.f32.mrf.mxu0
      %v1188 = vpop.f32.mrf.mxu0
      %v1189 = vadd.f32 %v1069, %v1188
      %v1190 = vpop.f32.mrf.mxu0
      %1191 = vmatprep.mubr.bf16.mxu0 0
      %1192 = vmatmul.mubr.bf16.gmra.mxu0 %v1045
      %v1193 = vpop.f32.mrf.mxu0
      %v1194 = vadd.f32 %v1069, %v1193
      %v1195 = vpop.f32.mrf.mxu0
      %v1196 = vpop.f32.mrf.mxu0
      %v1197 = vadd.f32 %v1069, %v1196
      %v1198 = vpop.f32.mrf.mxu0
      %1199 = vmatprep.mubr.bf16.mxu0 0
      %1200 = vmatmul.mubr.bf16.gmra.mxu0 %v1046
      %v1201 = vpop.f32.mrf.mxu0
      %v1202 = vadd.f32 %v1069, %v1201
      %v1203 = vpop.f32.mrf.mxu0
      %v1204 = vpop.f32.mrf.mxu0
      %v1205 = vadd.f32 %v1069, %v1204
      %v1206 = vpop.f32.mrf.mxu0
      %1207 = vmatprep.mubr.bf16.mxu0 0
      %1208 = vmatmul.mubr.bf16.gmra.mxu0 %v1047
      %v1209 = vpop.f32.mrf.mxu0
      %v1210 = vadd.f32 %v1069, %v1209
      %v1211 = vpop.f32.mrf.mxu0
      %v1212 = vpop.f32.mrf.mxu0
      %v1213 = vadd.f32 %v1069, %v1212
      %v1214 = vpop.f32.mrf.mxu0
      %1215 = vdwg.mxu0
      %v1216 = vmax.f32 %v1154, 0.0
      %v1217 = vmax.f32 %v1157, 0.0
      %v1218 = vmax.f32 %v1162, 0.0
      %v1219 = vmax.f32 %v1165, 0.0
      %v1220 = vmax.f32 %v1170, 0.0
      %v1221 = vmax.f32 %v1173, 0.0
      %v1222 = vmax.f32 %v1178, 0.0
      %v1223 = vmax.f32 %v1181, 0.0
      %v1224 = vmax.f32 %v1186, 0.0
      %v1225 = vmax.f32 %v1189, 0.0
      %v1226 = vmax.f32 %v1194, 0.0
      %v1227 = vmax.f32 %v1197, 0.0
      %v1228 = vmax.f32 %v1202, 0.0
      %v1229 = vmax.f32 %v1205, 0.0
      %v1230 = vmax.f32 %v1210, 0.0
      %v1231 = vmax.f32 %v1213, 0.0
      %v1232 = vpack.c.bf16 %v1217, %v1216
      %v1233 = vpack.c.bf16 %v1219, %v1218
      %v1234 = vpack.c.bf16 %v1221, %v1220
      %v1235 = vpack.c.bf16 %v1223, %v1222
      %v1236 = vpack.c.bf16 %v1225, %v1224
      %v1237 = vpack.c.bf16 %v1227, %v1226
      %v1238 = vpack.c.bf16 %v1229, %v1228
      %v1239 = vpack.c.bf16 %v1231, %v1230
      %v1240 = vld [vmem:[%s9] sm:$0xf]
      %v1241 = vld [vmem:[%s9 + $0x4] sm:$0xf]
      %v1242 = vld [vmem:[%s9 + $0x8] sm:$0xf]
      %v1243 = vld [vmem:[%s9 + $0xc] sm:$0xf]
      %v1244 = vld [vmem:[%s9 + $0x10] sm:$0xf]
      %v1245 = vld [vmem:[%s9 + $0x14] sm:$0xf]
      %v1246 = vld [vmem:[%s9 + $0x18] sm:$0xf]
      %v1247 = vld [vmem:[%s9 + $0x1c] sm:$0xf]
      %v1248 = vld [vmem:[%s9 + $0x20] sm:$0xf]
      %v1249 = vld [vmem:[%s9 + $0x24] sm:$0xf]
      %v1250 = vld [vmem:[%s9 + $0x28] sm:$0xf]
      %v1251 = vld [vmem:[%s9 + $0x2c] sm:$0xf]
      %v1252 = vld [vmem:[%s9 + $0x30] sm:$0xf]
      %v1253 = vld [vmem:[%s9 + $0x34] sm:$0xf]
      %v1254 = vld [vmem:[%s9 + $0x38] sm:$0xf]
      %v1255 = vld [vmem:[%s9 + $0x3c] sm:$0xf]
      %v1256 = vld [vmem:[%s10] sm:$0x1]
      %v1258 = vlaneseq
      %v1259 = vshrl.u32 %v1258, 7
      %v1260 = vsub.s32 0, %v1259
      %v1261 = vrot.slane %v1256, %v1260
      %v1279 = vunpack.c.l.b16 %v1240
      %v1280 = vunpack.c.l.b16 %v1241
      %v1281 = vunpack.c.l.b16 %v1242
      %v1282 = vunpack.c.l.b16 %v1243
      %v1283 = vunpack.c.l.b16 %v1244
      %v1284 = vunpack.c.l.b16 %v1245
      %v1285 = vunpack.c.l.b16 %v1246
      %v1286 = vunpack.c.l.b16 %v1247
      %v1287 = vunpack.c.l.b16 %v1248
      %v1288 = vunpack.c.l.b16 %v1249
      %v1289 = vunpack.c.l.b16 %v1250
      %v1290 = vunpack.c.l.b16 %v1251
      %v1291 = vunpack.c.l.b16 %v1252
      %v1292 = vunpack.c.l.b16 %v1253
      %v1293 = vunpack.c.l.b16 %v1254
      %v1294 = vunpack.c.l.b16 %v1255
      %v1295 = vpack.c.b16 %v1280, %v1279
      %v1296 = vpack.c.b16 %v1282, %v1281
      %v1297 = vpack.c.b16 %v1284, %v1283
      %v1298 = vpack.c.b16 %v1286, %v1285
      %v1299 = vpack.c.b16 %v1288, %v1287
      %v1300 = vpack.c.b16 %v1290, %v1289
      %v1301 = vpack.c.b16 %v1292, %v1291
      %v1302 = vpack.c.b16 %v1294, %v1293
      %1311 = vmatprep.subr.bf16.mxu0 0
      %1312 = vmatpush1.bf16.msra.mxu0 %v1302
      %1313 = vmatprep.subr.bf16.mxu0 0
      %1314 = vmatpush1.bf16.msra.mxu0 %v1301
      %1315 = vmatprep.subr.bf16.mxu0 0
      %1316 = vmatpush1.bf16.msra.mxu0 %v1300
      %1317 = vmatprep.subr.bf16.mxu0 0
      %1318 = vmatpush1.bf16.msra.mxu0 %v1299
      %1319 = vmatprep.subr.bf16.mxu0 0
      %1320 = vmatpush1.bf16.msra.mxu0 %v1298
      %1321 = vmatprep.subr.bf16.mxu0 0
      %1322 = vmatpush1.bf16.msra.mxu0 %v1297
      %1323 = vmatprep.subr.bf16.mxu0 0
      %1324 = vmatpush1.bf16.msra.mxu0 %v1296
      %1325 = vmatprep.subr.bf16.mxu0 0
      %1326 = vmatpush1.bf16.msra.mxu0 %v1295
      %1327 = vmatprep.subr.bf16.mxu0 0
      %1328 = vmatpush2.bf16.msra.mxu0 0
      %1329 = vmatprep.subr.bf16.mxu0 0
      %1330 = vmatpush2.bf16.msra.mxu0 0
      %1331 = vmatprep.subr.bf16.mxu0 0
      %1332 = vmatpush2.bf16.msra.mxu0 0
      %1333 = vmatprep.subr.bf16.mxu0 0
      %1334 = vmatpush2.bf16.msra.mxu0 0
      %1335 = vmatprep.subr.bf16.mxu0 0
      %1336 = vmatpush2.bf16.msra.mxu0 0
      %1337 = vmatprep.subr.bf16.mxu0 0
      %1338 = vmatpush2.bf16.msra.mxu0 0
      %1339 = vmatprep.subr.bf16.mxu0 0
      %1340 = vmatpush2.bf16.msra.mxu0 0
      %1341 = vmatprep.subr.bf16.mxu0 0
      %1342 = vmatpush2.bf16.msra.mxu0 0
      %1343 = vmatprep.mubr.bf16.mxu0 0
      %1344 = vmatmul.mubr.bf16.gmra.mxu0 %v1232
      %v1345 = vpop.f32.mrf.mxu0
      %v1346 = vadd.f32 %v1261, %v1345
      %v1347 = vpop.f32.mrf.mxu0
      %v1348 = vpop.f32.mrf.mxu0
      %v1349 = vadd.f32 %v1261, %v1348
      %v1350 = vpop.f32.mrf.mxu0
      %1351 = vmatprep.mubr.bf16.mxu0 0
      %1352 = vmatmul.mubr.bf16.gmra.mxu0 %v1233
      %v1353 = vpop.f32.mrf.mxu0
      %v1354 = vadd.f32 %v1261, %v1353
      %v1355 = vpop.f32.mrf.mxu0
      %v1356 = vpop.f32.mrf.mxu0
      %v1357 = vadd.f32 %v1261, %v1356
      %v1358 = vpop.f32.mrf.mxu0
      %1359 = vmatprep.mubr.bf16.mxu0 0
      %1360 = vmatmul.mubr.bf16.gmra.mxu0 %v1234
      %v1361 = vpop.f32.mrf.mxu0
      %v1362 = vadd.f32 %v1261, %v1361
      %v1363 = vpop.f32.mrf.mxu0
      %v1364 = vpop.f32.mrf.mxu0
      %v1365 = vadd.f32 %v1261, %v1364
      %v1366 = vpop.f32.mrf.mxu0
      %1367 = vmatprep.mubr.bf16.mxu0 0
      %1368 = vmatmul.mubr.bf16.gmra.mxu0 %v1235
      %v1369 = vpop.f32.mrf.mxu0
      %v1370 = vadd.f32 %v1261, %v1369
      %v1371 = vpop.f32.mrf.mxu0
      %v1372 = vpop.f32.mrf.mxu0
      %v1373 = vadd.f32 %v1261, %v1372
      %v1374 = vpop.f32.mrf.mxu0
      %1375 = vmatprep.mubr.bf16.mxu0 0
      %1376 = vmatmul.mubr.bf16.gmra.mxu0 %v1236
      %v1377 = vpop.f32.mrf.mxu0
      %v1378 = vadd.f32 %v1261, %v1377
      %v1379 = vpop.f32.mrf.mxu0
      %v1380 = vpop.f32.mrf.mxu0
      %v1381 = vadd.f32 %v1261, %v1380
      %v1382 = vpop.f32.mrf.mxu0
      %1383 = vmatprep.mubr.bf16.mxu0 0
      %1384 = vmatmul.mubr.bf16.gmra.mxu0 %v1237
      %v1385 = vpop.f32.mrf.mxu0
      %v1386 = vadd.f32 %v1261, %v1385
      %v1387 = vpop.f32.mrf.mxu0
      %v1388 = vpop.f32.mrf.mxu0
      %v1389 = vadd.f32 %v1261, %v1388
      %v1390 = vpop.f32.mrf.mxu0
      %1391 = vmatprep.mubr.bf16.mxu0 0
      %1392 = vmatmul.mubr.bf16.gmra.mxu0 %v1238
      %v1393 = vpop.f32.mrf.mxu0
      %v1394 = vadd.f32 %v1261, %v1393
      %v1395 = vpop.f32.mrf.mxu0
      %v1396 = vpop.f32.mrf.mxu0
      %v1397 = vadd.f32 %v1261, %v1396
      %v1398 = vpop.f32.mrf.mxu0
      %1399 = vmatprep.mubr.bf16.mxu0 0
      %1400 = vmatmul.mubr.bf16.gmra.mxu0 %v1239
      %v1401 = vpop.f32.mrf.mxu0
      %v1402 = vadd.f32 %v1261, %v1401
      %v1403 = vpop.f32.mrf.mxu0
      %v1404 = vpop.f32.mrf.mxu0
      %v1405 = vadd.f32 %v1261, %v1404
      %v1406 = vpop.f32.mrf.mxu0
      %1407 = vdwg.mxu0
      %1408 = vst.msk [vmem:[%s388] sm:$0xff] %vm438, %v1346
      %1409 = vst.msk [vmem:[%s388 + $0x8] sm:$0xff] %vm438, %v1349
      %1410 = vst.msk [vmem:[%s388 + $0x10] sm:$0xff] %vm438, %v1354
      %1411 = vst.msk [vmem:[%s388 + $0x18] sm:$0xff] %vm438, %v1357
      %1412 = vst.msk [vmem:[%s388 + $0x20] sm:$0xff] %vm438, %v1362
      %1413 = vst.msk [vmem:[%s388 + $0x28] sm:$0xff] %vm438, %v1365
      %1414 = vst.msk [vmem:[%s388 + $0x30] sm:$0xff] %vm438, %v1370
      %1415 = vst.msk [vmem:[%s388 + $0x38] sm:$0xff] %vm438, %v1373
      %1416 = vst.msk [vmem:[%s388 + $0x40] sm:$0xff] %vm438, %v1378
      %1417 = vst.msk [vmem:[%s388 + $0x48] sm:$0xff] %vm438, %v1381
      %1418 = vst.msk [vmem:[%s388 + $0x50] sm:$0xff] %vm438, %v1386
      %1419 = vst.msk [vmem:[%s388 + $0x58] sm:$0xff] %vm438, %v1389
      %1420 = vst.msk [vmem:[%s388 + $0x60] sm:$0xff] %vm438, %v1394
      %1421 = vst.msk [vmem:[%s388 + $0x68] sm:$0xff] %vm438, %v1397
      %1422 = vst.msk [vmem:[%s388 + $0x70] sm:$0xff] %vm438, %v1402
      %1423 = vst.msk [vmem:[%s388 + $0x78] sm:$0xff] %vm438, %v1405
      %s1424 = smul.u32 16, %s22
      %p1425 = scmp.lt.s32.totalorder %s1424, 31
      %s1426 = scalar_select %p1425, %s1424, 31
      %s1427 = smul.addr %s1426, 8
      %s1428 = scalar_lea.vmem %s11, %s1427
      // Predicated region
      $region65: #{ae_forward.1} parent=63 // pred_check
        %p1429 = pneg %p276
      $region66: #{ae_forward.1} parent=63 // pred_check_branch
        %1431 = sbr.rel (%p1429) target = $region68
      $region67: #{ae_forward.1} parent=63 // pred_region
        %s1432 = smul.u32 16, %s22
      $region68: #{ae_forward.1} parent=63 // pred_fallthru
        _
    $region64: #{ae_forward.1} parent=5 // pred_fallthru
      _
    %p1433 = scmp.le.s32.totalorder 2, %s17
    // Predicated region
    $region69: #{ae_forward.1} parent=5 // pred_check
      %p1434 = pneg %p1433
    $region70: #{ae_forward.1} parent=5 // pred_check_branch
      %1436 = sbr.rel (%p1434) target = $region72
    $region71: #{ae_forward.1} parent=5 // pred_region
      %s1437 = ssub.s32 %s17, 2
      // Predicated region
      $region73: #{ae_forward.1} parent=71 // pred_check
        %p1438 = pneg %p282
      $region74: #{ae_forward.1} parent=71 // pred_check_branch
        %1440 = sbr.rel (%p1438) target = $region76
      $region75: #{ae_forward.1} parent=71 // pred_region
        %s1441 = smul.u32 16, %s23
        %p1442 = scmp.lt.s32.totalorder %s1441, 31
        %s1443 = scalar_select %p1442, %s1441, 31
        %s1444 = smul.addr %s1443, 8
        %s1445 = scalar_lea.vmem %s11, %s1444
      $region76: #{ae_forward.1} parent=71 // pred_fallthru
        _
    $region72: #{ae_forward.1} parent=5 // pred_fallthru
      _
  $region6: #{ae_forward.1} parent=0 // loop_footer
    %s21 = sadd.s32 1, %s17
  $region7: #{ae_forward.1} parent=0 // loop_footer_branch
    %16 = sbr.rel target = $region3
  $region8: #{ae_forward.1} parent=0 // loop_exit
    _

</llo_original>
